<compile_context>
chip_gen: v7x
topology: tpu7x:2x2x1
jax: 0.10.0
libtpu: 0.0.40
codegen_flags: <defaults>
</compile_context>

<pallas_src>
import functools

import jax
import jax.numpy as jnp
from jax.experimental import pallas as pl
from jax.experimental.pallas import tpu as pltpu

# Safe across generations (v7x has 64 MiB/TC physical); on v5e/v6e this can be
# pushed toward ~96-100 MiB for bigger row tiles.
VMEM_LIMIT = 48 * 1024 * 1024


# ----------------------------------------------------------------------------
# Kernel 1 (small-graph / demo path): the WHOLE network in one pallas_call.
#   h <- X_pad
#   for l in layers:  h <- ReLU( [A_r@h * s_r ... | h] @ W_stack[l] + b[l] )
#   logits <- h @ W_h + X_pad @ W_x + b_out
# ----------------------------------------------------------------------------
def _fused_forward_kernel(a_ref, scale_ref, x_ref, w_ref, b_ref,
                          wh_ref, wx_ref, bo_ref, o_ref, h_scr, stack_scr,
                          *, L, R, FPAD):
    # a_ref:     (R, N, N)              bf16 {0,1} adjacency
    # scale_ref: (R, N, 1)              f32  1/in_deg (right norm)
    # x_ref:     (N, FPAD)              bf16 padded input features
    # w_ref:     (L, (R+1)*FPAD, FPAD)  bf16 row-stacked [W_r...; loop_W]
    # b_ref:     (L, 1, FPAD)           f32  biases
    # wh_ref:    (FPAD, CPAD) bf16, wx_ref: (FPAD, CPAD) bf16, bo_ref: (1, CPAD) f32
    # o_ref:     (N, CPAD) bf16
    # h_scr:     (N, FPAD) bf16 VMEM; stack_scr: (N, (R+1)*FPAD) bf16 VMEM
    h_scr[...] = x_ref[...]
    for l in range(L):                                   # static, L small
        h = h_scr[...]
        for r in range(R):                               # static, R small
            m = jnp.dot(a_ref[r], h, preferred_element_type=jnp.float32)
            m = m * scale_ref[r]                         # exact f32 row scale
            stack_scr[:, r * FPAD:(r + 1) * FPAD] = m.astype(stack_scr.dtype)
        stack_scr[:, R * FPAD:(R + 1) * FPAD] = h        # self-loop block
        acc = jnp.dot(stack_scr[...], w_ref[l],
                      preferred_element_type=jnp.float32) + b_ref[l]
        h_scr[...] = jnp.maximum(acc, 0.0).astype(h_scr.dtype)
    logit = jnp.dot(h_scr[...], wh_ref[...], preferred_element_type=jnp.float32)
    logit = logit + jnp.dot(x_ref[...], wx_ref[...],
                            preferred_element_type=jnp.float32)
    o_ref[...] = (logit + bo_ref[...]).astype(o_ref.dtype)


def fused_rgcn_forward(A_bin, scale, Xp, W_stack, b_stack, W_h, W_x, b_out):
    """Whole-network forward for graphs that fit VMEM.  Returns (N, CPAD) bf16."""
    R, N, _ = A_bin.shape
    L, K, FPAD = W_stack.shape
    CPAD = W_h.shape[1]
    kernel = functools.partial(_fused_forward_kernel, L=L, R=R, FPAD=FPAD)
    return pl.pallas_call(
        kernel,
        out_shape=jax.ShapeDtypeStruct((N, CPAD), jnp.bfloat16),
        scratch_shapes=[pltpu.VMEM((N, FPAD), jnp.bfloat16),
                        pltpu.VMEM((N, K), jnp.bfloat16)],
        compiler_params=pltpu.CompilerParams(vmem_limit_bytes=VMEM_LIMIT),
    )(A_bin, scale, Xp, W_stack, b_stack, W_h, W_x, b_out)


# ----------------------------------------------------------------------------
# Kernel 2 (production-shape path): one RGCN layer, row-tiled over dst nodes.
#   out_tile = ReLU( [A_r_tile@H * s_r ... | H_dst_tile] @ W_stack + bias )
# ----------------------------------------------------------------------------
def _layer_kernel(a_ref, scale_ref, h_ref, hd_ref, w_ref, b_ref, o_ref,
                  stack_scr, *, R, FPAD):
    # a_ref:     (R, tm, N)  bf16 {0,1} dst-row tile (streamed)
    # scale_ref: (R, tm, 1)  f32 1/in_deg for this tile (streamed)
    # h_ref:     (N, FPAD)   bf16 all source rows (resident)
    # hd_ref:    (tm, FPAD)  bf16 destination rows (self loop)
    # w_ref:     ((R+1)*FPAD, FPAD) bf16 stacked weights (resident)
    # b_ref:     (1, FPAD)   f32 (resident)
    # o_ref:     (tm, FPAD)  bf16
    h_all = h_ref[...]
    for r in range(R):
        m = jnp.dot(a_ref[r], h_all, preferred_element_type=jnp.float32)
        m = m * scale_ref[r]
        stack_scr[:, r * FPAD:(r + 1) * FPAD] = m.astype(stack_scr.dtype)
    stack_scr[:, R * FPAD:(R + 1) * FPAD] = hd_ref[...]
    acc = jnp.dot(stack_scr[...], w_ref[...], preferred_element_type=jnp.float32)
    o_ref[...] = jnp.maximum(acc + b_ref[...], 0.0).astype(o_ref.dtype)


def relgraph_layer(A_bin, scale, H, W_stack_l, bias, *, tm):
    """A_bin: (R,N,N) bf16 {0,1}; scale: (R,N,1) f32; H: (N,FPAD) bf16;
    W_stack_l: ((R+1)*FPAD, Fout) bf16; bias: (1,Fout) f32 -> (N,Fout) bf16."""
    R, N, _ = A_bin.shape
    FPAD = H.shape[1]
    K, Fout = W_stack_l.shape
    assert N % tm == 0  # TODO(synk): pl.cdiv grid + row masking (or pad N) for ragged N
    kernel = functools.partial(_layer_kernel, R=R, FPAD=FPAD)
    cost = pl.CostEstimate(
        flops=2 * R * N * N * FPAD + 2 * N * K * Fout,
        transcendentals=0,
        bytes_accessed=(R * N * N * 2) + 2 * (N * FPAD * 2) + (K * Fout * 2)
        + (N * Fout * 2) + (R * N * 4) + (Fout * 4),
    )
    return pl.pallas_call(
        kernel,
        out_shape=jax.ShapeDtypeStruct((N, Fout), jnp.bfloat16),
        grid_spec=pltpu.PrefetchScalarGridSpec(
            num_scalar_prefetch=0,
            grid=(N // tm,),
            in_specs=[
                pl.BlockSpec((R, tm, N), lambda i: (0, i, 0)),   # A row tiles (streamed)
                pl.BlockSpec((R, tm, 1), lambda i: (0, i, 0)),   # 1/deg row tiles
                pl.BlockSpec((N, FPAD), lambda i: (0, 0)),       # H resident
                pl.BlockSpec((tm, FPAD), lambda i: (i, 0)),      # H dst rows (self loop)
                pl.BlockSpec((K, Fout), lambda i: (0, 0)),       # stacked W resident
                pl.BlockSpec((1, Fout), lambda i: (0, 0)),       # bias resident
            ],
            out_specs=pl.BlockSpec((tm, Fout), lambda i: (i, 0)),
            scratch_shapes=[pltpu.VMEM((tm, K), jnp.bfloat16)],
        ),
        compiler_params=pltpu.CompilerParams(
            dimension_semantics=("parallel",),
            vmem_limit_bytes=VMEM_LIMIT,
        ),
        cost_estimate=cost,
    )(A_bin, scale, H, H, W_stack_l, bias)


# ----------------------------------------------------------------------------
# Kernel 3: fused output head (concat([h, X]) @ W_out + b, without the concat)
# ----------------------------------------------------------------------------
def fused_head_kernel(h_ref, x_ref, wh_ref, wx_ref, b_ref, o_ref):
    acc = jnp.dot(h_ref[...], wh_ref[...], preferred_element_type=jnp.float32)
    acc = acc + jnp.dot(x_ref[...], wx_ref[...], preferred_element_type=jnp.float32)
    o_ref[...] = (acc + b_ref[...]).astype(o_ref.dtype)


def fused_head(H, X, W_h, W_x, bias, *, tm):
    N, Fh = H.shape
    Fx = X.shape[1]
    Cp = W_h.shape[1]
    assert N % tm == 0
    return pl.pallas_call(
        fused_head_kernel,
        out_shape=jax.ShapeDtypeStruct((N, Cp), jnp.bfloat16),   # bf16 writeback
        grid_spec=pltpu.PrefetchScalarGridSpec(
            num_scalar_prefetch=0,
            grid=(N // tm,),
            in_specs=[
                pl.BlockSpec((tm, Fh), lambda i: (i, 0)),
                pl.BlockSpec((tm, Fx), lambda i: (i, 0)),
                pl.BlockSpec((Fh, Cp), lambda i: (0, 0)),
                pl.BlockSpec((Fx, Cp), lambda i: (0, 0)),
                pl.BlockSpec((1, Cp), lambda i: (0, 0)),
            ],
            out_specs=pl.BlockSpec((tm, Cp), lambda i: (i, 0)),
        ),
        compiler_params=pltpu.CompilerParams(
            dimension_semantics=("parallel",),
            vmem_limit_bytes=VMEM_LIMIT,
        ),
    )(H, X, W_h, W_x, bias)


# ----------------------------------------------------------------------------
# Plain-JAX glue: parameter init and the f32 reference
# ----------------------------------------------------------------------------
def xavier_uniform(key, shape, gain):
    fan_in, fan_out = shape[-2], shape[-1]
    bound = gain * (6.0 / (fan_in + fan_out)) ** 0.5
    return jax.random.uniform(key, shape, jnp.float32, -bound, bound)


def rgcn_reference(A, X, params_f32, W_out, b_out):
    h = X
    for (W, LW, b) in params_f32:
        msg = jnp.einsum("rij,jk->rik", A, h)      # per-relation right-norm agg
        agg = jnp.einsum("rik,rko->io", msg, W)    # per-relation weight + sum_r
        h = jax.nn.relu(agg + h @ LW + b)
    z = jnp.concatenate([h, X], axis=1)
    return z @ W_out + b_out


if __name__ == "__main__":
    # Small shapes consistent with the module / RGCN config:
    #   in_feats=8, h_feats=32, num_classes=4, 2 layers, 3 relations,
    #   32 nodes of a single node type, self_loop=True, bias=True, ReLU.
    N, IN_F, H_F, C, R, L = 32, 8, 32, 4, 3, 2
    TM = 16       # dst-row tile for the layered path; use 256-512 at real N
    FPAD = 128    # lane-dense hidden width
    CPAD = 128    # lane-dense head width

    key = jax.random.PRNGKey(0)
    keys = jax.random.split(key, 16)

    # Dense per-relation adjacency; GraphConv norm='right' (1/in_deg, clamp 1).
    A_raw = (jax.random.uniform(keys[0], (R, N, N)) < 0.3).astype(jnp.float32)
    in_deg = jnp.sum(A_raw, axis=2, keepdims=True)
    A_norm = A_raw / jnp.maximum(in_deg, 1.0)
    X = jax.random.normal(keys[1], (N, IN_F), jnp.float32)

    # xavier_uniform(ReLU gain) weights, zero biases — as in the module
    gain = 2.0 ** 0.5
    feat_dims = [IN_F] + [H_F] * L
    params_f32 = []
    kidx = 2
    for l in range(L):
        fin, fout = feat_dims[l], feat_dims[l + 1]
        W = xavier_uniform(keys[kidx], (R, fin, fout), gain); kidx += 1
        LW = xavier_uniform(keys[kidx], (fin, fout), gain); kidx += 1
        b = jnp.zeros((fout,), jnp.float32)
        params_f32.append((W, LW, b))
    W_out = xavier_uniform(keys[kidx], (H_F + IN_F, C), 1.0); kidx += 1
    b_out = jax.random.uniform(keys[kidx], (C,), jnp.float32, -0.1, 0.1)

    # --- kernel-side operands ------------------------------------------------
    # {0,1} adjacency is exact in bf16; the right-norm stays an f32 row scale.
    A_bin = A_raw.astype(jnp.bfloat16)                              # (R, N, N)
    scale = (1.0 / jnp.maximum(in_deg, 1.0)).astype(jnp.float32)    # (R, N, 1)

    # Pad input features to the lane-dense width (zero columns stay zero).
    Xp = jnp.zeros((N, FPAD), jnp.float32).at[:, :IN_F].set(X).astype(jnp.bfloat16)

    # Row-stacked padded per-layer weights: [(W_0;...;W_{R-1};loop_W)].
    W_stack_layers, b_layers = [], []
    for l, (W, LW, b) in enumerate(params_f32):
        fin, fout = W.shape[1], W.shape[2]
        Ws = jnp.zeros(((R + 1) * FPAD, FPAD), jnp.float32)
        for r in range(R):
            Ws = Ws.at[r * FPAD:r * FPAD + fin, :fout].set(W[r])
        Ws = Ws.at[R * FPAD:R * FPAD + fin, :fout].set(LW)
        W_stack_layers.append(Ws.astype(jnp.bfloat16))
        b_layers.append(jnp.zeros((FPAD,), jnp.float32).at[:fout].set(b))
    W_stack = jnp.stack(W_stack_layers)                 # (L, (R+1)*FPAD, FPAD)
    b_stack = jnp.stack(b_layers).reshape(L, 1, FPAD)   # (L, 1, FPAD) f32

    W_h = jnp.zeros((FPAD, CPAD), jnp.float32).at[:H_F, :C].set(W_out[:H_F]).astype(jnp.bfloat16)
    W_x = jnp.zeros((FPAD, CPAD), jnp.float32).at[:IN_F, :C].set(W_out[H_F:]).astype(jnp.bfloat16)
    b_out_p = jnp.zeros((1, CPAD), jnp.float32).at[0, :C].set(b_out)

    # --- path 1: single fully fused kernel (all layers + head, one launch) ----
    logits_fused = fused_rgcn_forward(A_bin, scale, Xp, W_stack, b_stack,
                                      W_h, W_x, b_out_p)

    # --- path 2: row-tiled per-layer kernels + fused head (production shape) --
    h = Xp
    for l in range(L):
        h = relgraph_layer(A_bin, scale, h, W_stack[l], b_stack[l], tm=TM)
    logits_layer = fused_head(h, Xp, W_h, W_x, b_out_p, tm=TM)

    logits_fused = jax.block_until_ready(logits_fused)[:, :C].astype(jnp.float32)
    logits_layer = jax.block_until_ready(logits_layer)[:, :C].astype(jnp.float32)

    # --- check against the pure-f32 reference (bf16-appropriate tolerance) ----
    ref = rgcn_reference(A_norm, X, params_f32, W_out, b_out)
    assert logits_fused.shape == (N, C) and logits_layer.shape == (N, C)

    def rel_err(x):
        return float(jnp.max(jnp.abs(x - ref)) / (jnp.max(jnp.abs(ref)) + 1e-6))

    e_fused, e_layer = rel_err(logits_fused), rel_err(logits_layer)
    assert e_fused < 5e-2, f"fused path mismatch vs f32 reference: rel_err={e_fused}"
    assert e_layer < 5e-2, f"layered path mismatch vs f32 reference: rel_err={e_layer}"

    print("KERNEL_OK")
</pallas_src>

<mosaic_0001>
module attributes {stable_mosaic.version = 11 : i64} {
  func.func @_fused_forward_kernel(%arg0: memref<3x32x32xbf16, #tpu.memory_space<vmem>>, %arg1: memref<3x32x1xf32, #tpu.memory_space<vmem>>, %arg2: memref<32x128xbf16, #tpu.memory_space<vmem>>, %arg3: memref<2x512x128xbf16, #tpu.memory_space<vmem>>, %arg4: memref<2x1x128xf32, #tpu.memory_space<vmem>>, %arg5: memref<128x128xbf16, #tpu.memory_space<vmem>>, %arg6: memref<128x128xbf16, #tpu.memory_space<vmem>>, %arg7: memref<1x128xf32, #tpu.memory_space<vmem>>, %arg8: memref<32x128xbf16, #tpu.memory_space<vmem>>, %arg9: memref<32x128xbf16, #tpu.memory_space<vmem>>, %arg10: memref<32x512xbf16, #tpu.memory_space<vmem>>) attributes {dimension_semantics = [], scalar_prefetch = 0 : i64, scratch_operands = 2 : i64, tpu.core_type = #tpu.core_type<tc>} {
    %c0 = arith.constant 0 : index
    %c0_0 = arith.constant 0 : index
    %0 = vector.load %arg2[%c0, %c0_0] : memref<32x128xbf16, #tpu.memory_space<vmem>>, vector<32x128xbf16>
    %c0_1 = arith.constant 0 : index
    %c0_2 = arith.constant 0 : index
    %1 = vector.load %arg9[%c0_1, %c0_2] : memref<32x128xbf16, #tpu.memory_space<vmem>>, vector<32x128xbf16>
    tpu.vector_store %arg9[%c0_1, %c0_2], %0 {strides = array<i32>} : memref<32x128xbf16, #tpu.memory_space<vmem>>, vector<32x128xbf16>,
    %c0_3 = arith.constant 0 : index
    %c0_4 = arith.constant 0 : index
    %2 = vector.load %arg9[%c0_3, %c0_4] : memref<32x128xbf16, #tpu.memory_space<vmem>>, vector<32x128xbf16>
    %c0_5 = arith.constant 0 : index
    %c0_6 = arith.constant 0 : index
    %c0_7 = arith.constant 0 : index
    %3 = vector.load %arg0[%c0_5, %c0_6, %c0_7] : memref<3x32x32xbf16, #tpu.memory_space<vmem>>, vector<1x32x32xbf16>
    %4 = vector.shape_cast %3 : vector<1x32x32xbf16> to vector<32x32xbf16>
    %cst = arith.constant dense<0.000000e+00> : vector<32x128xf32>
    %5 = tpu.matmul %4, %2, %cst {dimension_numbers = #tpu.dot_dimension_numbers<[1], [0], [0], [1], [0, 0, 1, 1], [], []>} : vector<32x32xbf16>, vector<32x128xbf16>, vector<32x128xf32> -> vector<32x128xf32>
    %c0_8 = arith.constant 0 : index
    %c0_9 = arith.constant 0 : index
    %c0_10 = arith.constant 0 : index
    %6 = vector.load %arg1[%c0_8, %c0_9, %c0_10] : memref<3x32x1xf32, #tpu.memory_space<vmem>>, vector<1x32x1xf32>
    %7 = vector.shape_cast %6 : vector<1x32x1xf32> to vector<32x1xf32>
    %8 = vector.broadcast %7 : vector<32x1xf32> to vector<32x128xf32>
    %9 = arith.mulf %5, %8 : vector<32x128xf32>
    %10 = arith.truncf %9 : vector<32x128xf32> to vector<32x128xbf16>
    %c0_11 = arith.constant 0 : index
    %c0_12 = arith.constant 0 : index
    %11 = vector.load %arg10[%c0_11, %c0_12] : memref<32x512xbf16, #tpu.memory_space<vmem>>, vector<32x128xbf16>
    tpu.vector_store %arg10[%c0_11, %c0_12], %10 {strides = array<i32>} : memref<32x512xbf16, #tpu.memory_space<vmem>>, vector<32x128xbf16>,
    %c1 = arith.constant 1 : index
    %c0_13 = arith.constant 0 : index
    %c0_14 = arith.constant 0 : index
    %12 = vector.load %arg0[%c1, %c0_13, %c0_14] : memref<3x32x32xbf16, #tpu.memory_space<vmem>>, vector<1x32x32xbf16>
    %13 = vector.shape_cast %12 : vector<1x32x32xbf16> to vector<32x32xbf16>
    %cst_15 = arith.constant dense<0.000000e+00> : vector<32x128xf32>
    %14 = tpu.matmul %13, %2, %cst_15 {dimension_numbers = #tpu.dot_dimension_numbers<[1], [0], [0], [1], [0, 0, 1, 1], [], []>} : vector<32x32xbf16>, vector<32x128xbf16>, vector<32x128xf32> -> vector<32x128xf32>
    %c1_16 = arith.constant 1 : index
    %c0_17 = arith.constant 0 : index
    %c0_18 = arith.constant 0 : index
    %15 = vector.load %arg1[%c1_16, %c0_17, %c0_18] : memref<3x32x1xf32, #tpu.memory_space<vmem>>, vector<1x32x1xf32>
    %16 = vector.shape_cast %15 : vector<1x32x1xf32> to vector<32x1xf32>
    %17 = vector.broadcast %16 : vector<32x1xf32> to vector<32x128xf32>
    %18 = arith.mulf %14, %17 : vector<32x128xf32>
    %19 = arith.truncf %18 : vector<32x128xf32> to vector<32x128xbf16>
    %c0_19 = arith.constant 0 : index
    %c128 = arith.constant 128 : index
    %20 = vector.load %arg10[%c0_19, %c128] : memref<32x512xbf16, #tpu.memory_space<vmem>>, vector<32x128xbf16>
    tpu.vector_store %arg10[%c0_19, %c128], %19 {strides = array<i32>} : memref<32x512xbf16, #tpu.memory_space<vmem>>, vector<32x128xbf16>,
    %c2 = arith.constant 2 : index
    %c0_20 = arith.constant 0 : index
    %c0_21 = arith.constant 0 : index
    %21 = vector.load %arg0[%c2, %c0_20, %c0_21] : memref<3x32x32xbf16, #tpu.memory_space<vmem>>, vector<1x32x32xbf16>
    %22 = vector.shape_cast %21 : vector<1x32x32xbf16> to vector<32x32xbf16>
    %cst_22 = arith.constant dense<0.000000e+00> : vector<32x128xf32>
    %23 = tpu.matmul %22, %2, %cst_22 {dimension_numbers = #tpu.dot_dimension_numbers<[1], [0], [0], [1], [0, 0, 1, 1], [], []>} : vector<32x32xbf16>, vector<32x128xbf16>, vector<32x128xf32> -> vector<32x128xf32>
    %c2_23 = arith.constant 2 : index
    %c0_24 = arith.constant 0 : index
    %c0_25 = arith.constant 0 : index
    %24 = vector.load %arg1[%c2_23, %c0_24, %c0_25] : memref<3x32x1xf32, #tpu.memory_space<vmem>>, vector<1x32x1xf32>
    %25 = vector.shape_cast %24 : vector<1x32x1xf32> to vector<32x1xf32>
    %26 = vector.broadcast %25 : vector<32x1xf32> to vector<32x128xf32>
    %27 = arith.mulf %23, %26 : vector<32x128xf32>
    %28 = arith.truncf %27 : vector<32x128xf32> to vector<32x128xbf16>
    %c0_26 = arith.constant 0 : index
    %c256 = arith.constant 256 : index
    %29 = vector.load %arg10[%c0_26, %c256] : memref<32x512xbf16, #tpu.memory_space<vmem>>, vector<32x128xbf16>
    tpu.vector_store %arg10[%c0_26, %c256], %28 {strides = array<i32>} : memref<32x512xbf16, #tpu.memory_space<vmem>>, vector<32x128xbf16>,
    %c0_27 = arith.constant 0 : index
    %c384 = arith.constant 384 : index
    %30 = vector.load %arg10[%c0_27, %c384] : memref<32x512xbf16, #tpu.memory_space<vmem>>, vector<32x128xbf16>
    tpu.vector_store %arg10[%c0_27, %c384], %2 {strides = array<i32>} : memref<32x512xbf16, #tpu.memory_space<vmem>>, vector<32x128xbf16>,
    %c0_28 = arith.constant 0 : index
    %c0_29 = arith.constant 0 : index
    %31 = vector.load %arg10[%c0_28, %c0_29] : memref<32x512xbf16, #tpu.memory_space<vmem>>, vector<32x512xbf16>
    %c0_30 = arith.constant 0 : index
    %c0_31 = arith.constant 0 : index
    %c0_32 = arith.constant 0 : index
    %32 = vector.load %arg3[%c0_30, %c0_31, %c0_32] : memref<2x512x128xbf16, #tpu.memory_space<vmem>>, vector<1x512x128xbf16>
    %33 = vector.shape_cast %32 : vector<1x512x128xbf16> to vector<512x128xbf16>
    %cst_33 = arith.constant dense<0.000000e+00> : vector<32x128xf32>
    %34 = tpu.matmul %31, %33, %cst_33 {dimension_numbers = #tpu.dot_dimension_numbers<[1], [0], [0], [1], [0, 0, 1, 1], [], []>} : vector<32x512xbf16>, vector<512x128xbf16>, vector<32x128xf32> -> vector<32x128xf32>
    %c0_34 = arith.constant 0 : index
    %c0_35 = arith.constant 0 : index
    %c0_36 = arith.constant 0 : index
    %35 = vector.load %arg4[%c0_34, %c0_35, %c0_36] : memref<2x1x128xf32, #tpu.memory_space<vmem>>, vector<1x1x128xf32>
    %36 = vector.shape_cast %35 : vector<1x1x128xf32> to vector<1x128xf32>
    %37 = vector.broadcast %36 : vector<1x128xf32> to vector<32x128xf32>
    %38 = arith.addf %34, %37 : vector<32x128xf32>
    %cst_37 = arith.constant 0.000000e+00 : f32
    %39 = vector.broadcast %cst_37 : f32 to vector<32x128xf32>
    %40 = arith.maximumf %38, %39 : vector<32x128xf32>
    %41 = arith.truncf %40 : vector<32x128xf32> to vector<32x128xbf16>
    %c0_38 = arith.constant 0 : index
    %c0_39 = arith.constant 0 : index
    %42 = vector.load %arg9[%c0_38, %c0_39] : memref<32x128xbf16, #tpu.memory_space<vmem>>, vector<32x128xbf16>
    tpu.vector_store %arg9[%c0_38, %c0_39], %41 {strides = array<i32>} : memref<32x128xbf16, #tpu.memory_space<vmem>>, vector<32x128xbf16>,
    %c0_40 = arith.constant 0 : index
    %c0_41 = arith.constant 0 : index
    %43 = vector.load %arg9[%c0_40, %c0_41] : memref<32x128xbf16, #tpu.memory_space<vmem>>, vector<32x128xbf16>
    %c0_42 = arith.constant 0 : index
    %c0_43 = arith.constant 0 : index
    %c0_44 = arith.constant 0 : index
    %44 = vector.load %arg0[%c0_42, %c0_43, %c0_44] : memref<3x32x32xbf16, #tpu.memory_space<vmem>>, vector<1x32x32xbf16>
    %45 = vector.shape_cast %44 : vector<1x32x32xbf16> to vector<32x32xbf16>
    %cst_45 = arith.constant dense<0.000000e+00> : vector<32x128xf32>
    %46 = tpu.matmul %45, %43, %cst_45 {dimension_numbers = #tpu.dot_dimension_numbers<[1], [0], [0], [1], [0, 0, 1, 1], [], []>} : vector<32x32xbf16>, vector<32x128xbf16>, vector<32x128xf32> -> vector<32x128xf32>
    %c0_46 = arith.constant 0 : index
    %c0_47 = arith.constant 0 : index
    %c0_48 = arith.constant 0 : index
    %47 = vector.load %arg1[%c0_46, %c0_47, %c0_48] : memref<3x32x1xf32, #tpu.memory_space<vmem>>, vector<1x32x1xf32>
    %48 = vector.shape_cast %47 : vector<1x32x1xf32> to vector<32x1xf32>
    %49 = vector.broadcast %48 : vector<32x1xf32> to vector<32x128xf32>
    %50 = arith.mulf %46, %49 : vector<32x128xf32>
    %51 = arith.truncf %50 : vector<32x128xf32> to vector<32x128xbf16>
    %c0_49 = arith.constant 0 : index
    %c0_50 = arith.constant 0 : index
    %52 = vector.load %arg10[%c0_49, %c0_50] : memref<32x512xbf16, #tpu.memory_space<vmem>>, vector<32x128xbf16>
    tpu.vector_store %arg10[%c0_49, %c0_50], %51 {strides = array<i32>} : memref<32x512xbf16, #tpu.memory_space<vmem>>, vector<32x128xbf16>,
    %c1_51 = arith.constant 1 : index
    %c0_52 = arith.constant 0 : index
    %c0_53 = arith.constant 0 : index
    %53 = vector.load %arg0[%c1_51, %c0_52, %c0_53] : memref<3x32x32xbf16, #tpu.memory_space<vmem>>, vector<1x32x32xbf16>
    %54 = vector.shape_cast %53 : vector<1x32x32xbf16> to vector<32x32xbf16>
    %cst_54 = arith.constant dense<0.000000e+00> : vector<32x128xf32>
    %55 = tpu.matmul %54, %43, %cst_54 {dimension_numbers = #tpu.dot_dimension_numbers<[1], [0], [0], [1], [0, 0, 1, 1], [], []>} : vector<32x32xbf16>, vector<32x128xbf16>, vector<32x128xf32> -> vector<32x128xf32>
    %c1_55 = arith.constant 1 : index
    %c0_56 = arith.constant 0 : index
    %c0_57 = arith.constant 0 : index
    %56 = vector.load %arg1[%c1_55, %c0_56, %c0_57] : memref<3x32x1xf32, #tpu.memory_space<vmem>>, vector<1x32x1xf32>
    %57 = vector.shape_cast %56 : vector<1x32x1xf32> to vector<32x1xf32>
    %58 = vector.broadcast %57 : vector<32x1xf32> to vector<32x128xf32>
    %59 = arith.mulf %55, %58 : vector<32x128xf32>
    %60 = arith.truncf %59 : vector<32x128xf32> to vector<32x128xbf16>
    %c0_58 = arith.constant 0 : index
    %c128_59 = arith.constant 128 : index
    %61 = vector.load %arg10[%c0_58, %c128_59] : memref<32x512xbf16, #tpu.memory_space<vmem>>, vector<32x128xbf16>
    tpu.vector_store %arg10[%c0_58, %c128_59], %60 {strides = array<i32>} : memref<32x512xbf16, #tpu.memory_space<vmem>>, vector<32x128xbf16>,
    %c2_60 = arith.constant 2 : index
    %c0_61 = arith.constant 0 : index
    %c0_62 = arith.constant 0 : index
    %62 = vector.load %arg0[%c2_60, %c0_61, %c0_62] : memref<3x32x32xbf16, #tpu.memory_space<vmem>>, vector<1x32x32xbf16>
    %63 = vector.shape_cast %62 : vector<1x32x32xbf16> to vector<32x32xbf16>
    %cst_63 = arith.constant dense<0.000000e+00> : vector<32x128xf32>
    %64 = tpu.matmul %63, %43, %cst_63 {dimension_numbers = #tpu.dot_dimension_numbers<[1], [0], [0], [1], [0, 0, 1, 1], [], []>} : vector<32x32xbf16>, vector<32x128xbf16>, vector<32x128xf32> -> vector<32x128xf32>
    %c2_64 = arith.constant 2 : index
    %c0_65 = arith.constant 0 : index
    %c0_66 = arith.constant 0 : index
    %65 = vector.load %arg1[%c2_64, %c0_65, %c0_66] : memref<3x32x1xf32, #tpu.memory_space<vmem>>, vector<1x32x1xf32>
    %66 = vector.shape_cast %65 : vector<1x32x1xf32> to vector<32x1xf32>
    %67 = vector.broadcast %66 : vector<32x1xf32> to vector<32x128xf32>
    %68 = arith.mulf %64, %67 : vector<32x128xf32>
    %69 = arith.truncf %68 : vector<32x128xf32> to vector<32x128xbf16>
    %c0_67 = arith.constant 0 : index
    %c256_68 = arith.constant 256 : index
    %70 = vector.load %arg10[%c0_67, %c256_68] : memref<32x512xbf16, #tpu.memory_space<vmem>>, vector<32x128xbf16>
    tpu.vector_store %arg10[%c0_67, %c256_68], %69 {strides = array<i32>} : memref<32x512xbf16, #tpu.memory_space<vmem>>, vector<32x128xbf16>,
    %c0_69 = arith.constant 0 : index
    %c384_70 = arith.constant 384 : index
    %71 = vector.load %arg10[%c0_69, %c384_70] : memref<32x512xbf16, #tpu.memory_space<vmem>>, vector<32x128xbf16>
    tpu.vector_store %arg10[%c0_69, %c384_70], %43 {strides = array<i32>} : memref<32x512xbf16, #tpu.memory_space<vmem>>, vector<32x128xbf16>,
    %c0_71 = arith.constant 0 : index
    %c0_72 = arith.constant 0 : index
    %72 = vector.load %arg10[%c0_71, %c0_72] : memref<32x512xbf16, #tpu.memory_space<vmem>>, vector<32x512xbf16>
    %c1_73 = arith.constant 1 : index
    %c0_74 = arith.constant 0 : index
    %c0_75 = arith.constant 0 : index
    %73 = vector.load %arg3[%c1_73, %c0_74, %c0_75] : memref<2x512x128xbf16, #tpu.memory_space<vmem>>, vector<1x512x128xbf16>
    %74 = vector.shape_cast %73 : vector<1x512x128xbf16> to vector<512x128xbf16>
    %cst_76 = arith.constant dense<0.000000e+00> : vector<32x128xf32>
    %75 = tpu.matmul %72, %74, %cst_76 {dimension_numbers = #tpu.dot_dimension_numbers<[1], [0], [0], [1], [0, 0, 1, 1], [], []>} : vector<32x512xbf16>, vector<512x128xbf16>, vector<32x128xf32> -> vector<32x128xf32>
    %c1_77 = arith.constant 1 : index
    %c0_78 = arith.constant 0 : index
    %c0_79 = arith.constant 0 : index
    %76 = vector.load %arg4[%c1_77, %c0_78, %c0_79] : memref<2x1x128xf32, #tpu.memory_space<vmem>>, vector<1x1x128xf32>
    %77 = vector.shape_cast %76 : vector<1x1x128xf32> to vector<1x128xf32>
    %78 = vector.broadcast %77 : vector<1x128xf32> to vector<32x128xf32>
    %79 = arith.addf %75, %78 : vector<32x128xf32>
    %cst_80 = arith.constant 0.000000e+00 : f32
    %80 = vector.broadcast %cst_80 : f32 to vector<32x128xf32>
    %81 = arith.maximumf %79, %80 : vector<32x128xf32>
    %82 = arith.truncf %81 : vector<32x128xf32> to vector<32x128xbf16>
    %c0_81 = arith.constant 0 : index
    %c0_82 = arith.constant 0 : index
    %83 = vector.load %arg9[%c0_81, %c0_82] : memref<32x128xbf16, #tpu.memory_space<vmem>>, vector<32x128xbf16>
    tpu.vector_store %arg9[%c0_81, %c0_82], %82 {strides = array<i32>} : memref<32x128xbf16, #tpu.memory_space<vmem>>, vector<32x128xbf16>,
    %c0_83 = arith.constant 0 : index
    %c0_84 = arith.constant 0 : index
    %84 = vector.load %arg9[%c0_83, %c0_84] : memref<32x128xbf16, #tpu.memory_space<vmem>>, vector<32x128xbf16>
    %c0_85 = arith.constant 0 : index
    %c0_86 = arith.constant 0 : index
    %85 = vector.load %arg5[%c0_85, %c0_86] : memref<128x128xbf16, #tpu.memory_space<vmem>>, vector<128x128xbf16>
    %cst_87 = arith.constant dense<0.000000e+00> : vector<32x128xf32>
    %86 = tpu.matmul %84, %85, %cst_87 {dimension_numbers = #tpu.dot_dimension_numbers<[1], [0], [0], [1], [0, 0, 1, 1], [], []>} : vector<32x128xbf16>, vector<128x128xbf16>, vector<32x128xf32> -> vector<32x128xf32>
    %c0_88 = arith.constant 0 : index
    %c0_89 = arith.constant 0 : index
    %87 = vector.load %arg2[%c0_88, %c0_89] : memref<32x128xbf16, #tpu.memory_space<vmem>>, vector<32x128xbf16>
    %c0_90 = arith.constant 0 : index
    %c0_91 = arith.constant 0 : index
    %88 = vector.load %arg6[%c0_90, %c0_91] : memref<128x128xbf16, #tpu.memory_space<vmem>>, vector<128x128xbf16>
    %cst_92 = arith.constant dense<0.000000e+00> : vector<32x128xf32>
    %89 = tpu.matmul %87, %88, %cst_92 {dimension_numbers = #tpu.dot_dimension_numbers<[1], [0], [0], [1], [0, 0, 1, 1], [], []>} : vector<32x128xbf16>, vector<128x128xbf16>, vector<32x128xf32> -> vector<32x128xf32>
    %90 = arith.addf %86, %89 : vector<32x128xf32>
    %c0_93 = arith.constant 0 : index
    %c0_94 = arith.constant 0 : index
    %91 = vector.load %arg7[%c0_93, %c0_94] : memref<1x128xf32, #tpu.memory_space<vmem>>, vector<1x128xf32>
    %92 = vector.broadcast %91 : vector<1x128xf32> to vector<32x128xf32>
    %93 = arith.addf %90, %92 : vector<32x128xf32>
    %94 = arith.truncf %93 : vector<32x128xf32> to vector<32x128xbf16>
    %c0_95 = arith.constant 0 : index
    %c0_96 = arith.constant 0 : index
    %95 = vector.load %arg8[%c0_95, %c0_96] : memref<32x128xbf16, #tpu.memory_space<vmem>>, vector<32x128xbf16>
    tpu.vector_store %arg8[%c0_95, %c0_96], %94 {strides = array<i32>} : memref<32x128xbf16, #tpu.memory_space<vmem>>, vector<32x128xbf16>,
    return
  }
}

</mosaic_0001>

<llo_original>
// kernel: tpu_custom_call.1
$region0: #{tpu_custom_call.1}
  #allocation0 [shape = 'u32[]', space=smem, size = 0x4, offset = 0x4, fixed_abs, tag = 'smem constant byte address 0x4 - core index']
  #allocation1 [shape = 'u32[144,128]{1,0:T(1,128)}', space=vmem, size = 0x12000, scoped, tag = 'internal scratch']
  #allocation2 [shape = 'bf16[32,128]{1,0:T(16,128)(2,1)}', space=vmem, size = 0x2000, scoped, tag = 'scratch operand']
  #allocation3 [shape = 'bf16[32,512]{1,0:T(16,128)(2,1)}', space=vmem, size = 0x8000, scoped, tag = 'scratch operand']
  %s0 = inlined_call_operand.vmem [shape: bf16[3,32,32], index: 0, kind: input, shape index: {}]
  %s1 = inlined_call_operand.vmem [shape: f32[3,32,1], index: 1, kind: input, shape index: {}]
  %s2 = inlined_call_operand.hbm [shape: bf16[32,128], index: 2, kind: input, shape index: {}]
  %s3 = inlined_call_operand.hbm [shape: bf16[2,512,128], index: 3, kind: input, shape index: {}]
  %s4 = inlined_call_operand.vmem [shape: f32[2,1,128], index: 4, kind: input, shape index: {}]
  %s5 = inlined_call_operand.vmem [shape: bf16[128,128], index: 5, kind: input, shape index: {}]
  %s6 = inlined_call_operand.hbm [shape: bf16[128,128], index: 6, kind: input, shape index: {}]
  %s7 = inlined_call_operand.vmem [shape: f32[1,128], index: 7, kind: input, shape index: {}]
  %s8 = inlined_call_operand.hbm [shape: bf16[32,128], index: 8, kind: output, shape index: {}]
  %s9 = sld [smem:[#allocation0]]
  $region54: #{tpu_custom_call.1} parent=0
    _
  %s11 = ssub.s32 1, %s9
  %s12 = scalar_select 0, %s11, %s9
  $region1: #{tpu_custom_call.1} parent=0
    #allocation4 [shape = 'u8[8192]{0}', space=vmem, size = 0x2000, scoped, tag = 'input window, operand 2, single buffered']
    #allocation5 [shape = 's32[1]{0}', space=sflag, size = 0x4, scoped, tag = 'scoped memory for tpu_custom_call.1']
    #allocation6 [shape = 's32[1]{0}', space=sflag, size = 0x4, scoped, tag = 'scoped memory for tpu_custom_call.1']
    #allocation7 [shape = 'u8[262144]{0}', space=vmem, size = 0x40000, scoped, tag = 'input window, operand 3, single buffered']
    #allocation8 [shape = 's32[1]{0}', space=sflag, size = 0x4, scoped, tag = 'scoped memory for tpu_custom_call.1']
    #allocation9 [shape = 'u8[32768]{0}', space=vmem, size = 0x8000, scoped, tag = 'input window, operand 6, single buffered']
    #allocation10 [shape = 'u8[8192]{0}', space=vmem, size = 0x2000, scoped, tag = 'output window, operand 0, single buffered']
    %13 = vsyncpa [#allocation5], 0
    %14 = vsyncpa [#allocation8], 0
    %15 = vsyncpa [#allocation6], 0
    // Predicated region
    $region2: #{tpu_custom_call.1} parent=1 // pred_check
      _
    $region3: #{tpu_custom_call.1} parent=1 // pred_check_branch
      %17 = sbr.rel (0) target = $region5
    $region4: #{tpu_custom_call.1} parent=1 // pred_region
      _
    $region5: #{tpu_custom_call.1} parent=1 // pred_fallthru
      _
    // Predicated region
    $region6: #{tpu_custom_call.1} parent=1 // pred_check
      _
    $region7: #{tpu_custom_call.1} parent=1 // pred_check_branch
      %19 = sbr.rel (0) target = $region9
    $region8: #{tpu_custom_call.1} parent=1 // pred_region
      _
    $region9: #{tpu_custom_call.1} parent=1 // pred_fallthru
      _
    // Predicated region
    $region10: #{tpu_custom_call.1} parent=1 // pred_check
      _
    $region11: #{tpu_custom_call.1} parent=1 // pred_check_branch
      %21 = sbr.rel (0) target = $region13
    $region12: #{tpu_custom_call.1} parent=1 // pred_region
      %s23 = ssub.s32 256, 256
      %24 = vsyncadd [#allocation5], %s23
      %s25 = sshll.u32 [#allocation4], 4
      %s26 = int_to_ptr.vmem [resolvable:$true] %s25
      %31 = dma.hbm_to_vmem [thread:$0]  %s2, 256, %s26, [#allocation5], 64, 64, 4
    $region13: #{tpu_custom_call.1} parent=1 // pred_fallthru
      _
    // Predicated region
    $region14: #{tpu_custom_call.1} parent=1 // pred_check
      _
    $region15: #{tpu_custom_call.1} parent=1 // pred_check_branch
      %33 = sbr.rel (0) target = $region17
    $region16: #{tpu_custom_call.1} parent=1 // pred_region
      %s35 = ssub.s32 8192, 8192
      %36 = vsyncadd [#allocation8], %s35
      %s37 = sshll.u32 [#allocation7], 4
      %s38 = int_to_ptr.vmem [resolvable:$true] %s37
      %43 = dma.hbm_to_vmem [thread:$0]  %s3, 8192, %s38, [#allocation8], 64, 64, 4
    $region17: #{tpu_custom_call.1} parent=1 // pred_fallthru
      _
    // Predicated region
    $region18: #{tpu_custom_call.1} parent=1 // pred_check
      _
    $region19: #{tpu_custom_call.1} parent=1 // pred_check_branch
      %45 = sbr.rel (0) target = $region21
    $region20: #{tpu_custom_call.1} parent=1 // pred_region
      _
    $region21: #{tpu_custom_call.1} parent=1 // pred_fallthru
      _
    // Predicated region
    $region22: #{tpu_custom_call.1} parent=1 // pred_check
      _
    $region23: #{tpu_custom_call.1} parent=1 // pred_check_branch
      %47 = sbr.rel (0) target = $region25
    $region24: #{tpu_custom_call.1} parent=1 // pred_region
      _
    $region25: #{tpu_custom_call.1} parent=1 // pred_fallthru
      _
    // Predicated region
    $region26: #{tpu_custom_call.1} parent=1 // pred_check
      _
    $region27: #{tpu_custom_call.1} parent=1 // pred_check_branch
      %49 = sbr.rel (0) target = $region29
    $region28: #{tpu_custom_call.1} parent=1 // pred_region
      %s51 = ssub.s32 1024, 1024
      %52 = vsyncadd [#allocation8], %s51
      %s53 = sshll.u32 [#allocation9], 4
      %s54 = int_to_ptr.vmem [resolvable:$true] %s53
      %59 = dma.hbm_to_vmem [thread:$0]  %s6, 1024, %s54, [#allocation8], 64, 64, 4
    $region29: #{tpu_custom_call.1} parent=1 // pred_fallthru
      _
    // Predicated region
    $region30: #{tpu_custom_call.1} parent=1 // pred_check
      _
    $region31: #{tpu_custom_call.1} parent=1 // pred_check_branch
      %61 = sbr.rel (0) target = $region33
    $region32: #{tpu_custom_call.1} parent=1 // pred_region
      _
    $region33: #{tpu_custom_call.1} parent=1 // pred_fallthru
      _
    // Predicated region
    $region34: #{tpu_custom_call.1} parent=1 // pred_check
      _
    $region35: #{tpu_custom_call.1} parent=1 // pred_check_branch
      %63 = sbr.rel (0) target = $region37
    $region36: #{tpu_custom_call.1} parent=1 // pred_region
      %64 = dma.done [#allocation5], 256
    $region37: #{tpu_custom_call.1} parent=1 // pred_fallthru
      _
    // Predicated region
    $region38: #{tpu_custom_call.1} parent=1 // pred_check
      _
    $region39: #{tpu_custom_call.1} parent=1 // pred_check_branch
      %66 = sbr.rel (0) target = $region41
    $region40: #{tpu_custom_call.1} parent=1 // pred_region
      %67 = dma.done [#allocation8], 8192
    $region41: #{tpu_custom_call.1} parent=1 // pred_fallthru
      _
    // Predicated region
    $region42: #{tpu_custom_call.1} parent=1 // pred_check
      _
    $region43: #{tpu_custom_call.1} parent=1 // pred_check_branch
      %69 = sbr.rel (0) target = $region45
    $region44: #{tpu_custom_call.1} parent=1 // pred_region
      %70 = dma.done [#allocation8], 1024
    $region45: #{tpu_custom_call.1} parent=1 // pred_fallthru
      _
    %v72 = vld [vmem:[#allocation4] sm:$0xf]
    %v73 = vld [vmem:[#allocation4 + $0x4] sm:$0xf]
    %v74 = vld [vmem:[#allocation4 + $0x8] sm:$0xf]
    %v75 = vld [vmem:[#allocation4 + $0xc] sm:$0xf]
    %v80 = vunpack.c.l.b16 %v72
    %v81 = vunpack.c.l.b16 %v73
    %v82 = vunpack.c.l.b16 %v74
    %v83 = vunpack.c.l.b16 %v75
    %v84 = vpack.c.b16 %v81, %v80
    %v85 = vpack.c.b16 %v83, %v82
    %88 = vst [vmem:[#allocation2] sm:$0xff] %v84
    %89 = vst [vmem:[#allocation2 + $0x8] sm:$0xff] %v85
    %v90 = vld [vmem:[#allocation2] sm:$0xff]
    %v91 = vld [vmem:[#allocation2 + $0x8] sm:$0xff]
    %v92 = vld [vmem:[%s0] sm:$0xf]
    %v93 = vld [vmem:[%s0 + $0x4] sm:$0xf]
    %v94 = vld [vmem:[%s0 + $0x8] sm:$0xf]
    %v95 = vld [vmem:[%s0 + $0xc] sm:$0xf]
    %v100 = vunpack.c.l.b16 %v92
    %v101 = vunpack.c.l.b16 %v93
    %v102 = vunpack.c.l.b16 %v94
    %v103 = vunpack.c.l.b16 %v95
    %v104 = vpack.c.b16 %v101, %v100
    %v105 = vpack.c.b16 %v103, %v102
    %vm106 = vcmask 261120
    %v108 = vsel %vm106, %v104, 0
    %v111 = vsel %vm106, %v105, 0
    %113 = vmatprep.subr.bf16.mxu0 0
    %114 = vmatpush1.bf16.msra.mxu0 %v90
    %115 = vmatprep.subr.bf16.mxu0 0
    %116 = vmatpush1.bf16.msra.mxu0 %v91
    %117 = vmatprep.subr.bf16.mxu0 0
    %118 = vmatpush1.bf16.msra.mxu0 0
    %119 = vmatprep.subr.bf16.mxu0 0
    %120 = vmatpush1.bf16.msra.mxu0 0
    %121 = vmatprep.subr.bf16.mxu0 0
    %122 = vmatpush1.bf16.msra.mxu0 0
    %123 = vmatprep.subr.bf16.mxu0 0
    %124 = vmatpush1.bf16.msra.mxu0 0
    %125 = vmatprep.subr.bf16.mxu0 0
    %126 = vmatpush1.bf16.msra.mxu0 0
    %127 = vmatprep.subr.bf16.mxu0 0
    %128 = vmatpush1.bf16.msra.mxu0 0
    %129 = vmatprep.subr.bf16.mxu0 0
    %130 = vmatpush1.bf16.msra.mxu0 0
    %131 = vmatprep.subr.bf16.mxu0 0
    %132 = vmatpush1.bf16.msra.mxu0 0
    %133 = vmatprep.subr.bf16.mxu0 0
    %134 = vmatpush1.bf16.msra.mxu0 0
    %135 = vmatprep.subr.bf16.mxu0 0
    %136 = vmatpush1.bf16.msra.mxu0 0
    %137 = vmatprep.subr.bf16.mxu0 0
    %138 = vmatpush1.bf16.msra.mxu0 0
    %139 = vmatprep.subr.bf16.mxu0 0
    %140 = vmatpush1.bf16.msra.mxu0 0
    %141 = vmatprep.subr.bf16.mxu0 0
    %142 = vmatpush1.bf16.msra.mxu0 0
    %143 = vmatprep.subr.bf16.mxu0 0
    %144 = vmatpush1.bf16.msra.mxu0 0
    %145 = vmatprep.mubr.bf16.mxu0 0
    %146 = vmatmul.mubr.bf16.gmra.mrb[0].mxu0 %v108
    %v147 = vpop.f32.mrb[0].mxu0
    %v148 = vadd.f32 0.0, %v147
    %v149 = vpop.f32.mrb[0].mxu0
    %v150 = vpop.f32.mrb[0].mxu0
    %v151 = vadd.f32 0.0, %v150
    %v152 = vpop.f32.mrb[0].mxu0
    %153 = vmatprep.mubr.bf16.mxu0 0
    %154 = vmatmul.mubr.bf16.gmra.mrb[0].mxu0 %v111
    %v155 = vpop.f32.mrb[0].mxu0
    %v156 = vadd.f32 0.0, %v155
    %v157 = vpop.f32.mrb[0].mxu0
    %v158 = vpop.f32.mrb[0].mxu0
    %v159 = vadd.f32 0.0, %v158
    %v160 = vpop.f32.mrb[0].mxu0
    %161 = vdwg.mxu0
    %v162 = vld [vmem:[%s1] sm:$0xff]
    %v163 = vld [vmem:[%s1 + $0x8] sm:$0xff]
    %v164 = vld [vmem:[%s1 + $0x10] sm:$0xff]
    %v165 = vld [vmem:[%s1 + $0x18] sm:$0xff]
    %167 = vset.pattern.permute.xlu0 0
    %168 = vperm.xlu0 %167, %v162
    %v169 = vpop.permute.xlu0 %168
    %172 = vset.pattern.permute.xlu0 0
    %173 = vperm.xlu0 %172, %v163
    %v174 = vpop.permute.xlu0 %173
    %177 = vset.pattern.permute.xlu0 0
    %178 = vperm.xlu0 %177, %v164
    %v179 = vpop.permute.xlu0 %178
    %182 = vset.pattern.permute.xlu0 0
    %183 = vperm.xlu0 %182, %v165
    %v184 = vpop.permute.xlu0 %183
    %v186 = vmul.f32 %v148, %v169
    %v187 = vmul.f32 %v151, %v174
    %v188 = vmul.f32 %v156, %v179
    %v189 = vmul.f32 %v159, %v184
    %v190 = vpack.c.bf16 %v187, %v186
    %v191 = vpack.c.bf16 %v189, %v188
    %192 = vst [vmem:[#allocation3] sm:$0xff] %v190
    %193 = vst [vmem:[#allocation3 + $0x20] sm:$0xff] %v191
    %s194 = scalar_lea.vmem %s0, 16
    %v195 = vld [vmem:[%s194] sm:$0xf]
    %v196 = vld [vmem:[%s194 + $0x4] sm:$0xf]
    %v197 = vld [vmem:[%s194 + $0x8] sm:$0xf]
    %v198 = vld [vmem:[%s194 + $0xc] sm:$0xf]
    %v203 = vunpack.c.l.b16 %v195
    %v204 = vunpack.c.l.b16 %v196
    %v205 = vunpack.c.l.b16 %v197
    %v206 = vunpack.c.l.b16 %v198
    %v207 = vpack.c.b16 %v204, %v203
    %v208 = vpack.c.b16 %v206, %v205
    %v210 = vsel %vm106, %v207, 0
    %v213 = vsel %vm106, %v208, 0
    %215 = vmatprep.subr.bf16.mxu0 0
    %216 = vmatpush1.bf16.msra.mxu0 %v90
    %217 = vmatprep.subr.bf16.mxu0 0
    %218 = vmatpush1.bf16.msra.mxu0 %v91
    %219 = vmatprep.subr.bf16.mxu0 0
    %220 = vmatpush1.bf16.msra.mxu0 0
    %221 = vmatprep.subr.bf16.mxu0 0
    %222 = vmatpush1.bf16.msra.mxu0 0
    %223 = vmatprep.subr.bf16.mxu0 0
    %224 = vmatpush1.bf16.msra.mxu0 0
    %225 = vmatprep.subr.bf16.mxu0 0
    %226 = vmatpush1.bf16.msra.mxu0 0
    %227 = vmatprep.subr.bf16.mxu0 0
    %228 = vmatpush1.bf16.msra.mxu0 0
    %229 = vmatprep.subr.bf16.mxu0 0
    %230 = vmatpush1.bf16.msra.mxu0 0
    %231 = vmatprep.subr.bf16.mxu0 0
    %232 = vmatpush1.bf16.msra.mxu0 0
    %233 = vmatprep.subr.bf16.mxu0 0
    %234 = vmatpush1.bf16.msra.mxu0 0
    %235 = vmatprep.subr.bf16.mxu0 0
    %236 = vmatpush1.bf16.msra.mxu0 0
    %237 = vmatprep.subr.bf16.mxu0 0
    %238 = vmatpush1.bf16.msra.mxu0 0
    %239 = vmatprep.subr.bf16.mxu0 0
    %240 = vmatpush1.bf16.msra.mxu0 0
    %241 = vmatprep.subr.bf16.mxu0 0
    %242 = vmatpush1.bf16.msra.mxu0 0
    %243 = vmatprep.subr.bf16.mxu0 0
    %244 = vmatpush1.bf16.msra.mxu0 0
    %245 = vmatprep.subr.bf16.mxu0 0
    %246 = vmatpush1.bf16.msra.mxu0 0
    %247 = vmatprep.mubr.bf16.mxu0 0
    %248 = vmatmul.mubr.bf16.gmra.mrb[0].mxu0 %v210
    %v249 = vpop.f32.mrb[0].mxu0
    %v250 = vadd.f32 0.0, %v249
    %v251 = vpop.f32.mrb[0].mxu0
    %v252 = vpop.f32.mrb[0].mxu0
    %v253 = vadd.f32 0.0, %v252
    %v254 = vpop.f32.mrb[0].mxu0
    %255 = vmatprep.mubr.bf16.mxu0 0
    %256 = vmatmul.mubr.bf16.gmra.mrb[0].mxu0 %v213
    %v257 = vpop.f32.mrb[0].mxu0
    %v258 = vadd.f32 0.0, %v257
    %v259 = vpop.f32.mrb[0].mxu0
    %v260 = vpop.f32.mrb[0].mxu0
    %v261 = vadd.f32 0.0, %v260
    %v262 = vpop.f32.mrb[0].mxu0
    %263 = vdwg.mxu0
    %s264 = scalar_lea.vmem %s1, 32
    %v265 = vld [vmem:[%s264] sm:$0xff]
    %v266 = vld [vmem:[%s264 + $0x8] sm:$0xff]
    %v267 = vld [vmem:[%s264 + $0x10] sm:$0xff]
    %v268 = vld [vmem:[%s264 + $0x18] sm:$0xff]
    %270 = vset.pattern.permute.xlu0 0
    %271 = vperm.xlu0 %270, %v265
    %v272 = vpop.permute.xlu0 %271
    %275 = vset.pattern.permute.xlu0 0
    %276 = vperm.xlu0 %275, %v266
    %v277 = vpop.permute.xlu0 %276
    %280 = vset.pattern.permute.xlu0 0
    %281 = vperm.xlu0 %280, %v267
    %v282 = vpop.permute.xlu0 %281
    %285 = vset.pattern.permute.xlu0 0
    %286 = vperm.xlu0 %285, %v268
    %v287 = vpop.permute.xlu0 %286
    %v289 = vmul.f32 %v250, %v272
    %v290 = vmul.f32 %v253, %v277
    %v291 = vmul.f32 %v258, %v282
    %v292 = vmul.f32 %v261, %v287
    %v293 = vpack.c.bf16 %v290, %v289
    %v294 = vpack.c.bf16 %v292, %v291
    %295 = vst [vmem:[#allocation3 + $0x8] sm:$0xff] %v293
    %296 = vst [vmem:[#allocation3 + $0x28] sm:$0xff] %v294
    %s297 = scalar_lea.vmem %s0, 32
    %v298 = vld [vmem:[%s297] sm:$0xf]
    %v299 = vld [vmem:[%s297 + $0x4] sm:$0xf]
    %v300 = vld [vmem:[%s297 + $0x8] sm:$0xf]
    %v301 = vld [vmem:[%s297 + $0xc] sm:$0xf]
    %v306 = vunpack.c.l.b16 %v298
    %v307 = vunpack.c.l.b16 %v299
    %v308 = vunpack.c.l.b16 %v300
    %v309 = vunpack.c.l.b16 %v301
    %v310 = vpack.c.b16 %v307, %v306
    %v311 = vpack.c.b16 %v309, %v308
    %v313 = vsel %vm106, %v310, 0
    %v316 = vsel %vm106, %v311, 0
    %318 = vmatprep.subr.bf16.mxu0 0
    %319 = vmatpush1.bf16.msra.mxu0 %v90
    %320 = vmatprep.subr.bf16.mxu0 0
    %321 = vmatpush1.bf16.msra.mxu0 %v91
    %322 = vmatprep.subr.bf16.mxu0 0
    %323 = vmatpush1.bf16.msra.mxu0 0
    %324 = vmatprep.subr.bf16.mxu0 0
    %325 = vmatpush1.bf16.msra.mxu0 0
    %326 = vmatprep.subr.bf16.mxu0 0
    %327 = vmatpush1.bf16.msra.mxu0 0
    %328 = vmatprep.subr.bf16.mxu0 0
    %329 = vmatpush1.bf16.msra.mxu0 0
    %330 = vmatprep.subr.bf16.mxu0 0
    %331 = vmatpush1.bf16.msra.mxu0 0
    %332 = vmatprep.subr.bf16.mxu0 0
    %333 = vmatpush1.bf16.msra.mxu0 0
    %334 = vmatprep.subr.bf16.mxu0 0
    %335 = vmatpush1.bf16.msra.mxu0 0
    %336 = vmatprep.subr.bf16.mxu0 0
    %337 = vmatpush1.bf16.msra.mxu0 0
    %338 = vmatprep.subr.bf16.mxu0 0
    %339 = vmatpush1.bf16.msra.mxu0 0
    %340 = vmatprep.subr.bf16.mxu0 0
    %341 = vmatpush1.bf16.msra.mxu0 0
    %342 = vmatprep.subr.bf16.mxu0 0
    %343 = vmatpush1.bf16.msra.mxu0 0
    %344 = vmatprep.subr.bf16.mxu0 0
    %345 = vmatpush1.bf16.msra.mxu0 0
    %346 = vmatprep.subr.bf16.mxu0 0
    %347 = vmatpush1.bf16.msra.mxu0 0
    %348 = vmatprep.subr.bf16.mxu0 0
    %349 = vmatpush1.bf16.msra.mxu0 0
    %350 = vmatprep.mubr.bf16.mxu0 0
    %351 = vmatmul.mubr.bf16.gmra.mrb[0].mxu0 %v313
    %v352 = vpop.f32.mrb[0].mxu0
    %v353 = vadd.f32 0.0, %v352
    %v354 = vpop.f32.mrb[0].mxu0
    %v355 = vpop.f32.mrb[0].mxu0
    %v356 = vadd.f32 0.0, %v355
    %v357 = vpop.f32.mrb[0].mxu0
    %358 = vmatprep.mubr.bf16.mxu0 0
    %359 = vmatmul.mubr.bf16.gmra.mrb[0].mxu0 %v316
    %v360 = vpop.f32.mrb[0].mxu0
    %v361 = vadd.f32 0.0, %v360
    %v362 = vpop.f32.mrb[0].mxu0
    %v363 = vpop.f32.mrb[0].mxu0
    %v364 = vadd.f32 0.0, %v363
    %v365 = vpop.f32.mrb[0].mxu0
    %366 = vdwg.mxu0
    %s367 = scalar_lea.vmem %s1, 64
    %v368 = vld [vmem:[%s367] sm:$0xff]
    %v369 = vld [vmem:[%s367 + $0x8] sm:$0xff]
    %v370 = vld [vmem:[%s367 + $0x10] sm:$0xff]
    %v371 = vld [vmem:[%s367 + $0x18] sm:$0xff]
    %373 = vset.pattern.permute.xlu0 0
    %374 = vperm.xlu0 %373, %v368
    %v375 = vpop.permute.xlu0 %374
    %378 = vset.pattern.permute.xlu0 0
    %379 = vperm.xlu0 %378, %v369
    %v380 = vpop.permute.xlu0 %379
    %383 = vset.pattern.permute.xlu0 0
    %384 = vperm.xlu0 %383, %v370
    %v385 = vpop.permute.xlu0 %384
    %388 = vset.pattern.permute.xlu0 0
    %389 = vperm.xlu0 %388, %v371
    %v390 = vpop.permute.xlu0 %389
    %v392 = vmul.f32 %v353, %v375
    %v393 = vmul.f32 %v356, %v380
    %v394 = vmul.f32 %v361, %v385
    %v395 = vmul.f32 %v364, %v390
    %v396 = vpack.c.bf16 %v393, %v392
    %v397 = vpack.c.bf16 %v395, %v394
    %398 = vst [vmem:[#allocation3 + $0x10] sm:$0xff] %v396
    %399 = vst [vmem:[#allocation3 + $0x30] sm:$0xff] %v397
    %400 = vst [vmem:[#allocation3 + $0x18] sm:$0xff] %v90
    %401 = vst [vmem:[#allocation3 + $0x38] sm:$0xff] %v91
    %v402 = vld [vmem:[#allocation3] sm:$0xff]
    %v403 = vld [vmem:[#allocation3 + $0x8] sm:$0xff]
    %v404 = vld [vmem:[#allocation3 + $0x10] sm:$0xff]
    %v405 = vld [vmem:[#allocation3 + $0x18] sm:$0xff]
    %v406 = vld [vmem:[#allocation3 + $0x20] sm:$0xff]
    %v407 = vld [vmem:[#allocation3 + $0x28] sm:$0xff]
    %v408 = vld [vmem:[#allocation3 + $0x30] sm:$0xff]
    %v409 = vld [vmem:[#allocation3 + $0x38] sm:$0xff]
    %v410 = vld [vmem:[#allocation7] sm:$0xf]
    %v411 = vld [vmem:[#allocation7 + $0x4] sm:$0xf]
    %v412 = vld [vmem:[#allocation7 + $0x8] sm:$0xf]
    %v413 = vld [vmem:[#allocation7 + $0xc] sm:$0xf]
    %v414 = vld [vmem:[#allocation7 + $0x10] sm:$0xf]
    %v415 = vld [vmem:[#allocation7 + $0x14] sm:$0xf]
    %v416 = vld [vmem:[#allocation7 + $0x18] sm:$0xf]
    %v417 = vld [vmem:[#allocation7 + $0x1c] sm:$0xf]
    %v418 = vld [vmem:[#allocation7 + $0x20] sm:$0xf]
    %v419 = vld [vmem:[#allocation7 + $0x24] sm:$0xf]
    %v420 = vld [vmem:[#allocation7 + $0x28] sm:$0xf]
    %v421 = vld [vmem:[#allocation7 + $0x2c] sm:$0xf]
    %v422 = vld [vmem:[#allocation7 + $0x30] sm:$0xf]
    %v423 = vld [vmem:[#allocation7 + $0x34] sm:$0xf]
    %v424 = vld [vmem:[#allocation7 + $0x38] sm:$0xf]
    %v425 = vld [vmem:[#allocation7 + $0x3c] sm:$0xf]
    %v426 = vld [vmem:[#allocation7 + $0x40] sm:$0xf]
    %v427 = vld [vmem:[#allocation7 + $0x44] sm:$0xf]
    %v428 = vld [vmem:[#allocation7 + $0x48] sm:$0xf]
    %v429 = vld [vmem:[#allocation7 + $0x4c] sm:$0xf]
    %v430 = vld [vmem:[#allocation7 + $0x50] sm:$0xf]
    %v431 = vld [vmem:[#allocation7 + $0x54] sm:$0xf]
    %v432 = vld [vmem:[#allocation7 + $0x58] sm:$0xf]
    %v433 = vld [vmem:[#allocation7 + $0x5c] sm:$0xf]
    %v434 = vld [vmem:[#allocation7 + $0x60] sm:$0xf]
    %v435 = vld [vmem:[#allocation7 + $0x64] sm:$0xf]
    %v436 = vld [vmem:[#allocation7 + $0x68] sm:$0xf]
    %v437 = vld [vmem:[#allocation7 + $0x6c] sm:$0xf]
    %v438 = vld [vmem:[#allocation7 + $0x70] sm:$0xf]
    %v439 = vld [vmem:[#allocation7 + $0x74] sm:$0xf]
    %v440 = vld [vmem:[#allocation7 + $0x78] sm:$0xf]
    %v441 = vld [vmem:[#allocation7 + $0x7c] sm:$0xf]
    %v442 = vld [vmem:[#allocation7 + $0x80] sm:$0xf]
    %v443 = vld [vmem:[#allocation7 + $0x84] sm:$0xf]
    %v444 = vld [vmem:[#allocation7 + $0x88] sm:$0xf]
    %v445 = vld [vmem:[#allocation7 + $0x8c] sm:$0xf]
    %v446 = vld [vmem:[#allocation7 + $0x90] sm:$0xf]
    %v447 = vld [vmem:[#allocation7 + $0x94] sm:$0xf]
    %v448 = vld [vmem:[#allocation7 + $0x98] sm:$0xf]
    %v449 = vld [vmem:[#allocation7 + $0x9c] sm:$0xf]
    %v450 = vld [vmem:[#allocation7 + $0xa0] sm:$0xf]
    %v451 = vld [vmem:[#allocation7 + $0xa4] sm:$0xf]
    %v452 = vld [vmem:[#allocation7 + $0xa8] sm:$0xf]
    %v453 = vld [vmem:[#allocation7 + $0xac] sm:$0xf]
    %v454 = vld [vmem:[#allocation7 + $0xb0] sm:$0xf]
    %v455 = vld [vmem:[#allocation7 + $0xb4] sm:$0xf]
    %v456 = vld [vmem:[#allocation7 + $0xb8] sm:$0xf]
    %v457 = vld [vmem:[#allocation7 + $0xbc] sm:$0xf]
    %v458 = vld [vmem:[#allocation7 + $0xc0] sm:$0xf]
    %v459 = vld [vmem:[#allocation7 + $0xc4] sm:$0xf]
    %v460 = vld [vmem:[#allocation7 + $0xc8] sm:$0xf]
    %v461 = vld [vmem:[#allocation7 + $0xcc] sm:$0xf]
    %v462 = vld [vmem:[#allocation7 + $0xd0] sm:$0xf]
    %v463 = vld [vmem:[#allocation7 + $0xd4] sm:$0xf]
    %v464 = vld [vmem:[#allocation7 + $0xd8] sm:$0xf]
    %v465 = vld [vmem:[#allocation7 + $0xdc] sm:$0xf]
    %v466 = vld [vmem:[#allocation7 + $0xe0] sm:$0xf]
    %v467 = vld [vmem:[#allocation7 + $0xe4] sm:$0xf]
    %v468 = vld [vmem:[#allocation7 + $0xe8] sm:$0xf]
    %v469 = vld [vmem:[#allocation7 + $0xec] sm:$0xf]
    %v470 = vld [vmem:[#allocation7 + $0xf0] sm:$0xf]
    %v471 = vld [vmem:[#allocation7 + $0xf4] sm:$0xf]
    %v472 = vld [vmem:[#allocation7 + $0xf8] sm:$0xf]
    %v473 = vld [vmem:[#allocation7 + $0xfc] sm:$0xf]
    %v474 = vld [vmem:[%s4] sm:$0x1]
    %v476 = vlaneseq
    %v477 = vshrl.u32 %v476, 7
    %v478 = vsub.s32 0, %v477
    %v479 = vrot.slane %v474, %v478
    %v545 = vunpack.c.l.b16 %v410
    %v546 = vunpack.c.l.b16 %v411
    %v547 = vunpack.c.l.b16 %v412
    %v548 = vunpack.c.l.b16 %v413
    %v549 = vunpack.c.l.b16 %v414
    %v550 = vunpack.c.l.b16 %v415
    %v551 = vunpack.c.l.b16 %v416
    %v552 = vunpack.c.l.b16 %v417
    %v553 = vunpack.c.l.b16 %v418
    %v554 = vunpack.c.l.b16 %v419
    %v555 = vunpack.c.l.b16 %v420
    %v556 = vunpack.c.l.b16 %v421
    %v557 = vunpack.c.l.b16 %v422
    %v558 = vunpack.c.l.b16 %v423
    %v559 = vunpack.c.l.b16 %v424
    %v560 = vunpack.c.l.b16 %v425
    %v561 = vunpack.c.l.b16 %v426
    %v562 = vunpack.c.l.b16 %v427
    %v563 = vunpack.c.l.b16 %v428
    %v564 = vunpack.c.l.b16 %v429
    %v565 = vunpack.c.l.b16 %v430
    %v566 = vunpack.c.l.b16 %v431
    %v567 = vunpack.c.l.b16 %v432
    %v568 = vunpack.c.l.b16 %v433
    %v569 = vunpack.c.l.b16 %v434
    %v570 = vunpack.c.l.b16 %v435
    %v571 = vunpack.c.l.b16 %v436
    %v572 = vunpack.c.l.b16 %v437
    %v573 = vunpack.c.l.b16 %v438
    %v574 = vunpack.c.l.b16 %v439
    %v575 = vunpack.c.l.b16 %v440
    %v576 = vunpack.c.l.b16 %v441
    %v577 = vunpack.c.l.b16 %v442
    %v578 = vunpack.c.l.b16 %v443
    %v579 = vunpack.c.l.b16 %v444
    %v580 = vunpack.c.l.b16 %v445
    %v581 = vunpack.c.l.b16 %v446
    %v582 = vunpack.c.l.b16 %v447
    %v583 = vunpack.c.l.b16 %v448
    %v584 = vunpack.c.l.b16 %v449
    %v585 = vunpack.c.l.b16 %v450
    %v586 = vunpack.c.l.b16 %v451
    %v587 = vunpack.c.l.b16 %v452
    %v588 = vunpack.c.l.b16 %v453
    %v589 = vunpack.c.l.b16 %v454
    %v590 = vunpack.c.l.b16 %v455
    %v591 = vunpack.c.l.b16 %v456
    %v592 = vunpack.c.l.b16 %v457
    %v593 = vunpack.c.l.b16 %v458
    %v594 = vunpack.c.l.b16 %v459
    %v595 = vunpack.c.l.b16 %v460
    %v596 = vunpack.c.l.b16 %v461
    %v597 = vunpack.c.l.b16 %v462
    %v598 = vunpack.c.l.b16 %v463
    %v599 = vunpack.c.l.b16 %v464
    %v600 = vunpack.c.l.b16 %v465
    %v601 = vunpack.c.l.b16 %v466
    %v602 = vunpack.c.l.b16 %v467
    %v603 = vunpack.c.l.b16 %v468
    %v604 = vunpack.c.l.b16 %v469
    %v605 = vunpack.c.l.b16 %v470
    %v606 = vunpack.c.l.b16 %v471
    %v607 = vunpack.c.l.b16 %v472
    %v608 = vunpack.c.l.b16 %v473
    %v609 = vpack.c.b16 %v546, %v545
    %v610 = vpack.c.b16 %v548, %v547
    %v611 = vpack.c.b16 %v550, %v549
    %v612 = vpack.c.b16 %v552, %v551
    %v613 = vpack.c.b16 %v554, %v553
    %v614 = vpack.c.b16 %v556, %v555
    %v615 = vpack.c.b16 %v558, %v557
    %v616 = vpack.c.b16 %v560, %v559
    %v617 = vpack.c.b16 %v562, %v561
    %v618 = vpack.c.b16 %v564, %v563
    %v619 = vpack.c.b16 %v566, %v565
    %v620 = vpack.c.b16 %v568, %v567
    %v621 = vpack.c.b16 %v570, %v569
    %v622 = vpack.c.b16 %v572, %v571
    %v623 = vpack.c.b16 %v574, %v573
    %v624 = vpack.c.b16 %v576, %v575
    %v625 = vpack.c.b16 %v578, %v577
    %v626 = vpack.c.b16 %v580, %v579
    %v627 = vpack.c.b16 %v582, %v581
    %v628 = vpack.c.b16 %v584, %v583
    %v629 = vpack.c.b16 %v586, %v585
    %v630 = vpack.c.b16 %v588, %v587
    %v631 = vpack.c.b16 %v590, %v589
    %v632 = vpack.c.b16 %v592, %v591
    %v633 = vpack.c.b16 %v594, %v593
    %v634 = vpack.c.b16 %v596, %v595
    %v635 = vpack.c.b16 %v598, %v597
    %v636 = vpack.c.b16 %v600, %v599
    %v637 = vpack.c.b16 %v602, %v601
    %v638 = vpack.c.b16 %v604, %v603
    %v639 = vpack.c.b16 %v606, %v605
    %v640 = vpack.c.b16 %v608, %v607
    %673 = vmatprep.subr.bf16.mxu0 0
    %674 = vmatpush1.bf16.msra.mxu0 %v609
    %675 = vmatprep.subr.bf16.mxu0 0
    %676 = vmatpush1.bf16.msra.mxu0 %v610
    %677 = vmatprep.subr.bf16.mxu0 0
    %678 = vmatpush1.bf16.msra.mxu0 %v611
    %679 = vmatprep.subr.bf16.mxu0 0
    %680 = vmatpush1.bf16.msra.mxu0 %v612
    %681 = vmatprep.subr.bf16.mxu0 0
    %682 = vmatpush1.bf16.msra.mxu0 %v613
    %683 = vmatprep.subr.bf16.mxu0 0
    %684 = vmatpush1.bf16.msra.mxu0 %v614
    %685 = vmatprep.subr.bf16.mxu0 0
    %686 = vmatpush1.bf16.msra.mxu0 %v615
    %687 = vmatprep.subr.bf16.mxu0 0
    %688 = vmatpush1.bf16.msra.mxu0 %v616
    %689 = vmatprep.subr.bf16.mxu0 0
    %690 = vmatpush1.bf16.msra.mxu0 %v617
    %691 = vmatprep.subr.bf16.mxu0 0
    %692 = vmatpush1.bf16.msra.mxu0 %v618
    %693 = vmatprep.subr.bf16.mxu0 0
    %694 = vmatpush1.bf16.msra.mxu0 %v619
    %695 = vmatprep.subr.bf16.mxu0 0
    %696 = vmatpush1.bf16.msra.mxu0 %v620
    %697 = vmatprep.subr.bf16.mxu0 0
    %698 = vmatpush1.bf16.msra.mxu0 %v621
    %699 = vmatprep.subr.bf16.mxu0 0
    %700 = vmatpush1.bf16.msra.mxu0 %v622
    %701 = vmatprep.subr.bf16.mxu0 0
    %702 = vmatpush1.bf16.msra.mxu0 %v623
    %703 = vmatprep.subr.bf16.mxu0 0
    %704 = vmatpush1.bf16.msra.mxu0 %v624
    %705 = vmatprep.mubr.bf16.mxu0 %v403
    %706 = vmatmul.mubr.bf16.gmra.mrb[0].mxu0 %v402
    %v707 = vpop.f32.mrb[0].mxu0
    %v708 = vadd.f32 %v479, %v707
    %v709 = vpop.f32.mrb[0].mxu0
    %v710 = vpop.f32.mrb[0].mxu0
    %v711 = vadd.f32 %v479, %v710
    %v712 = vpop.f32.mrb[0].mxu0
    %713 = vmatprep.mubr.bf16.mxu0 %v407
    %714 = vmatmul.mubr.bf16.gmra.mrb[0].mxu0 %v406
    %v715 = vpop.f32.mrb[0].mxu0
    %v716 = vadd.f32 %v479, %v715
    %v717 = vpop.f32.mrb[0].mxu0
    %v718 = vpop.f32.mrb[0].mxu0
    %v719 = vadd.f32 %v479, %v718
    %v720 = vpop.f32.mrb[0].mxu0
    %721 = vdwg.mxu0
    %722 = vmatprep.subr.bf16.mxu0 0
    %723 = vmatpush1.bf16.msra.mxu0 %v625
    %724 = vmatprep.subr.bf16.mxu0 0
    %725 = vmatpush1.bf16.msra.mxu0 %v626
    %726 = vmatprep.subr.bf16.mxu0 0
    %727 = vmatpush1.bf16.msra.mxu0 %v627
    %728 = vmatprep.subr.bf16.mxu0 0
    %729 = vmatpush1.bf16.msra.mxu0 %v628
    %730 = vmatprep.subr.bf16.mxu0 0
    %731 = vmatpush1.bf16.msra.mxu0 %v629
    %732 = vmatprep.subr.bf16.mxu0 0
    %733 = vmatpush1.bf16.msra.mxu0 %v630
    %734 = vmatprep.subr.bf16.mxu0 0
    %735 = vmatpush1.bf16.msra.mxu0 %v631
    %736 = vmatprep.subr.bf16.mxu0 0
    %737 = vmatpush1.bf16.msra.mxu0 %v632
    %738 = vmatprep.subr.bf16.mxu0 0
    %739 = vmatpush1.bf16.msra.mxu0 %v633
    %740 = vmatprep.subr.bf16.mxu0 0
    %741 = vmatpush1.bf16.msra.mxu0 %v634
    %742 = vmatprep.subr.bf16.mxu0 0
    %743 = vmatpush1.bf16.msra.mxu0 %v635
    %744 = vmatprep.subr.bf16.mxu0 0
    %745 = vmatpush1.bf16.msra.mxu0 %v636
    %746 = vmatprep.subr.bf16.mxu0 0
    %747 = vmatpush1.bf16.msra.mxu0 %v637
    %748 = vmatprep.subr.bf16.mxu0 0
    %749 = vmatpush1.bf16.msra.mxu0 %v638
    %750 = vmatprep.subr.bf16.mxu0 0
    %751 = vmatpush1.bf16.msra.mxu0 %v639
    %752 = vmatprep.subr.bf16.mxu0 0
    %753 = vmatpush1.bf16.msra.mxu0 %v640
    %754 = vmatprep.mubr.bf16.mxu0 %v405
    %755 = vmatmul.mubr.bf16.gmra.mrb[0].mxu0 %v404
    %v756 = vpop.f32.mrb[0].mxu0
    %v757 = vadd.f32 %v708, %v756
    %v758 = vpop.f32.mrb[0].mxu0
    %v759 = vpop.f32.mrb[0].mxu0
    %v760 = vadd.f32 %v711, %v759
    %v761 = vpop.f32.mrb[0].mxu0
    %762 = vmatprep.mubr.bf16.mxu0 %v409
    %763 = vmatmul.mubr.bf16.gmra.mrb[0].mxu0 %v408
    %v764 = vpop.f32.mrb[0].mxu0
    %v765 = vadd.f32 %v716, %v764
    %v766 = vpop.f32.mrb[0].mxu0
    %v767 = vpop.f32.mrb[0].mxu0
    %v768 = vadd.f32 %v719, %v767
    %v769 = vpop.f32.mrb[0].mxu0
    %770 = vdwg.mxu0
    %v771 = vmax.f32 %v757, 0.0
    %v772 = vmax.f32 %v760, 0.0
    %v773 = vmax.f32 %v765, 0.0
    %v774 = vmax.f32 %v768, 0.0
    %v775 = vpack.c.bf16 %v772, %v771
    %v776 = vpack.c.bf16 %v774, %v773
    %777 = vst [vmem:[#allocation2] sm:$0xff] %v775
    %778 = vst [vmem:[#allocation2 + $0x8] sm:$0xff] %v776
    %v779 = vld [vmem:[#allocation2] sm:$0xff]
    %v780 = vld [vmem:[#allocation2 + $0x8] sm:$0xff]
    %v781 = vld [vmem:[%s0] sm:$0xf]
    %v782 = vld [vmem:[%s0 + $0x4] sm:$0xf]
    %v783 = vld [vmem:[%s0 + $0x8] sm:$0xf]
    %v784 = vld [vmem:[%s0 + $0xc] sm:$0xf]
    %v789 = vunpack.c.l.b16 %v781
    %v790 = vunpack.c.l.b16 %v782
    %v791 = vunpack.c.l.b16 %v783
    %v792 = vunpack.c.l.b16 %v784
    %v793 = vpack.c.b16 %v790, %v789
    %v794 = vpack.c.b16 %v792, %v791
    %v796 = vsel %vm106, %v793, 0
    %v799 = vsel %vm106, %v794, 0
    %801 = vmatprep.subr.bf16.mxu0 0
    %802 = vmatpush1.bf16.msra.mxu0 %v779
    %803 = vmatprep.subr.bf16.mxu0 0
    %804 = vmatpush1.bf16.msra.mxu0 %v780
    %805 = vmatprep.subr.bf16.mxu0 0
    %806 = vmatpush1.bf16.msra.mxu0 0
    %807 = vmatprep.subr.bf16.mxu0 0
    %808 = vmatpush1.bf16.msra.mxu0 0
    %809 = vmatprep.subr.bf16.mxu0 0
    %810 = vmatpush1.bf16.msra.mxu0 0
    %811 = vmatprep.subr.bf16.mxu0 0
    %812 = vmatpush1.bf16.msra.mxu0 0
    %813 = vmatprep.subr.bf16.mxu0 0
    %814 = vmatpush1.bf16.msra.mxu0 0
    %815 = vmatprep.subr.bf16.mxu0 0
    %816 = vmatpush1.bf16.msra.mxu0 0
    %817 = vmatprep.subr.bf16.mxu0 0
    %818 = vmatpush1.bf16.msra.mxu0 0
    %819 = vmatprep.subr.bf16.mxu0 0
    %820 = vmatpush1.bf16.msra.mxu0 0
    %821 = vmatprep.subr.bf16.mxu0 0
    %822 = vmatpush1.bf16.msra.mxu0 0
    %823 = vmatprep.subr.bf16.mxu0 0
    %824 = vmatpush1.bf16.msra.mxu0 0
    %825 = vmatprep.subr.bf16.mxu0 0
    %826 = vmatpush1.bf16.msra.mxu0 0
    %827 = vmatprep.subr.bf16.mxu0 0
    %828 = vmatpush1.bf16.msra.mxu0 0
    %829 = vmatprep.subr.bf16.mxu0 0
    %830 = vmatpush1.bf16.msra.mxu0 0
    %831 = vmatprep.subr.bf16.mxu0 0
    %832 = vmatpush1.bf16.msra.mxu0 0
    %833 = vmatprep.mubr.bf16.mxu0 0
    %834 = vmatmul.mubr.bf16.gmra.mrb[0].mxu0 %v796
    %v835 = vpop.f32.mrb[0].mxu0
    %v836 = vadd.f32 0.0, %v835
    %v837 = vpop.f32.mrb[0].mxu0
    %v838 = vpop.f32.mrb[0].mxu0
    %v839 = vadd.f32 0.0, %v838
    %v840 = vpop.f32.mrb[0].mxu0
    %841 = vmatprep.mubr.bf16.mxu0 0
    %842 = vmatmul.mubr.bf16.gmra.mrb[0].mxu0 %v799
    %v843 = vpop.f32.mrb[0].mxu0
    %v844 = vadd.f32 0.0, %v843
    %v845 = vpop.f32.mrb[0].mxu0
    %v846 = vpop.f32.mrb[0].mxu0
    %v847 = vadd.f32 0.0, %v846
    %v848 = vpop.f32.mrb[0].mxu0
    %849 = vdwg.mxu0
    %v850 = vld [vmem:[%s1] sm:$0xff]
    %v851 = vld [vmem:[%s1 + $0x8] sm:$0xff]
    %v852 = vld [vmem:[%s1 + $0x10] sm:$0xff]
    %v853 = vld [vmem:[%s1 + $0x18] sm:$0xff]
    %855 = vset.pattern.permute.xlu0 0
    %856 = vperm.xlu0 %855, %v850
    %v857 = vpop.permute.xlu0 %856
    %860 = vset.pattern.permute.xlu0 0
    %861 = vperm.xlu0 %860, %v851
    %v862 = vpop.permute.xlu0 %861
    %865 = vset.pattern.permute.xlu0 0
    %866 = vperm.xlu0 %865, %v852
    %v867 = vpop.permute.xlu0 %866
    %870 = vset.pattern.permute.xlu0 0
    %871 = vperm.xlu0 %870, %v853
    %v872 = vpop.permute.xlu0 %871
    %v874 = vmul.f32 %v836, %v857
    %v875 = vmul.f32 %v839, %v862
    %v876 = vmul.f32 %v844, %v867
    %v877 = vmul.f32 %v847, %v872
    %v878 = vpack.c.bf16 %v875, %v874
    %v879 = vpack.c.bf16 %v877, %v876
    %880 = vst [vmem:[#allocation3] sm:$0xff] %v878
    %881 = vst [vmem:[#allocation3 + $0x20] sm:$0xff] %v879
    %v882 = vld [vmem:[%s194] sm:$0xf]
    %v883 = vld [vmem:[%s194 + $0x4] sm:$0xf]
    %v884 = vld [vmem:[%s194 + $0x8] sm:$0xf]
    %v885 = vld [vmem:[%s194 + $0xc] sm:$0xf]
    %v890 = vunpack.c.l.b16 %v882
    %v891 = vunpack.c.l.b16 %v883
    %v892 = vunpack.c.l.b16 %v884
    %v893 = vunpack.c.l.b16 %v885
    %v894 = vpack.c.b16 %v891, %v890
    %v895 = vpack.c.b16 %v893, %v892
    %v897 = vsel %vm106, %v894, 0
    %v900 = vsel %vm106, %v895, 0
    %902 = vmatprep.subr.bf16.mxu0 0
    %903 = vmatpush1.bf16.msra.mxu0 %v779
    %904 = vmatprep.subr.bf16.mxu0 0
    %905 = vmatpush1.bf16.msra.mxu0 %v780
    %906 = vmatprep.subr.bf16.mxu0 0
    %907 = vmatpush1.bf16.msra.mxu0 0
    %908 = vmatprep.subr.bf16.mxu0 0
    %909 = vmatpush1.bf16.msra.mxu0 0
    %910 = vmatprep.subr.bf16.mxu0 0
    %911 = vmatpush1.bf16.msra.mxu0 0
    %912 = vmatprep.subr.bf16.mxu0 0
    %913 = vmatpush1.bf16.msra.mxu0 0
    %914 = vmatprep.subr.bf16.mxu0 0
    %915 = vmatpush1.bf16.msra.mxu0 0
    %916 = vmatprep.subr.bf16.mxu0 0
    %917 = vmatpush1.bf16.msra.mxu0 0
    %918 = vmatprep.subr.bf16.mxu0 0
    %919 = vmatpush1.bf16.msra.mxu0 0
    %920 = vmatprep.subr.bf16.mxu0 0
    %921 = vmatpush1.bf16.msra.mxu0 0
    %922 = vmatprep.subr.bf16.mxu0 0
    %923 = vmatpush1.bf16.msra.mxu0 0
    %924 = vmatprep.subr.bf16.mxu0 0
    %925 = vmatpush1.bf16.msra.mxu0 0
    %926 = vmatprep.subr.bf16.mxu0 0
    %927 = vmatpush1.bf16.msra.mxu0 0
    %928 = vmatprep.subr.bf16.mxu0 0
    %929 = vmatpush1.bf16.msra.mxu0 0
    %930 = vmatprep.subr.bf16.mxu0 0
    %931 = vmatpush1.bf16.msra.mxu0 0
    %932 = vmatprep.subr.bf16.mxu0 0
    %933 = vmatpush1.bf16.msra.mxu0 0
    %934 = vmatprep.mubr.bf16.mxu0 0
    %935 = vmatmul.mubr.bf16.gmra.mrb[0].mxu0 %v897
    %v936 = vpop.f32.mrb[0].mxu0
    %v937 = vadd.f32 0.0, %v936
    %v938 = vpop.f32.mrb[0].mxu0
    %v939 = vpop.f32.mrb[0].mxu0
    %v940 = vadd.f32 0.0, %v939
    %v941 = vpop.f32.mrb[0].mxu0
    %942 = vmatprep.mubr.bf16.mxu0 0
    %943 = vmatmul.mubr.bf16.gmra.mrb[0].mxu0 %v900
    %v944 = vpop.f32.mrb[0].mxu0
    %v945 = vadd.f32 0.0, %v944
    %v946 = vpop.f32.mrb[0].mxu0
    %v947 = vpop.f32.mrb[0].mxu0
    %v948 = vadd.f32 0.0, %v947
    %v949 = vpop.f32.mrb[0].mxu0
    %950 = vdwg.mxu0
    %v951 = vld [vmem:[%s264] sm:$0xff]
    %v952 = vld [vmem:[%s264 + $0x8] sm:$0xff]
    %v953 = vld [vmem:[%s264 + $0x10] sm:$0xff]
    %v954 = vld [vmem:[%s264 + $0x18] sm:$0xff]
    %956 = vset.pattern.permute.xlu0 0
    %957 = vperm.xlu0 %956, %v951
    %v958 = vpop.permute.xlu0 %957
    %961 = vset.pattern.permute.xlu0 0
    %962 = vperm.xlu0 %961, %v952
    %v963 = vpop.permute.xlu0 %962
    %966 = vset.pattern.permute.xlu0 0
    %967 = vperm.xlu0 %966, %v953
    %v968 = vpop.permute.xlu0 %967
    %971 = vset.pattern.permute.xlu0 0
    %972 = vperm.xlu0 %971, %v954
    %v973 = vpop.permute.xlu0 %972
    %v975 = vmul.f32 %v937, %v958
    %v976 = vmul.f32 %v940, %v963
    %v977 = vmul.f32 %v945, %v968
    %v978 = vmul.f32 %v948, %v973
    %v979 = vpack.c.bf16 %v976, %v975
    %v980 = vpack.c.bf16 %v978, %v977
    %981 = vst [vmem:[#allocation3 + $0x8] sm:$0xff] %v979
    %982 = vst [vmem:[#allocation3 + $0x28] sm:$0xff] %v980
    %v983 = vld [vmem:[%s297] sm:$0xf]
    %v984 = vld [vmem:[%s297 + $0x4] sm:$0xf]
    %v985 = vld [vmem:[%s297 + $0x8] sm:$0xf]
    %v986 = vld [vmem:[%s297 + $0xc] sm:$0xf]
    %v991 = vunpack.c.l.b16 %v983
    %v992 = vunpack.c.l.b16 %v984
    %v993 = vunpack.c.l.b16 %v985
    %v994 = vunpack.c.l.b16 %v986
    %v995 = vpack.c.b16 %v992, %v991
    %v996 = vpack.c.b16 %v994, %v993
    %v998 = vsel %vm106, %v995, 0
    %v1001 = vsel %vm106, %v996, 0
    %1003 = vmatprep.subr.bf16.mxu0 0
    %1004 = vmatpush1.bf16.msra.mxu0 %v779
    %1005 = vmatprep.subr.bf16.mxu0 0
    %1006 = vmatpush1.bf16.msra.mxu0 %v780
    %1007 = vmatprep.subr.bf16.mxu0 0
    %1008 = vmatpush1.bf16.msra.mxu0 0
    %1009 = vmatprep.subr.bf16.mxu0 0
    %1010 = vmatpush1.bf16.msra.mxu0 0
    %1011 = vmatprep.subr.bf16.mxu0 0
    %1012 = vmatpush1.bf16.msra.mxu0 0
    %1013 = vmatprep.subr.bf16.mxu0 0
    %1014 = vmatpush1.bf16.msra.mxu0 0
    %1015 = vmatprep.subr.bf16.mxu0 0
    %1016 = vmatpush1.bf16.msra.mxu0 0
    %1017 = vmatprep.subr.bf16.mxu0 0
    %1018 = vmatpush1.bf16.msra.mxu0 0
    %1019 = vmatprep.subr.bf16.mxu0 0
    %1020 = vmatpush1.bf16.msra.mxu0 0
    %1021 = vmatprep.subr.bf16.mxu0 0
    %1022 = vmatpush1.bf16.msra.mxu0 0
    %1023 = vmatprep.subr.bf16.mxu0 0
    %1024 = vmatpush1.bf16.msra.mxu0 0
    %1025 = vmatprep.subr.bf16.mxu0 0
    %1026 = vmatpush1.bf16.msra.mxu0 0
    %1027 = vmatprep.subr.bf16.mxu0 0
    %1028 = vmatpush1.bf16.msra.mxu0 0
    %1029 = vmatprep.subr.bf16.mxu0 0
    %1030 = vmatpush1.bf16.msra.mxu0 0
    %1031 = vmatprep.subr.bf16.mxu0 0
    %1032 = vmatpush1.bf16.msra.mxu0 0
    %1033 = vmatprep.subr.bf16.mxu0 0
    %1034 = vmatpush1.bf16.msra.mxu0 0
    %1035 = vmatprep.mubr.bf16.mxu0 0
    %1036 = vmatmul.mubr.bf16.gmra.mrb[0].mxu0 %v998
    %v1037 = vpop.f32.mrb[0].mxu0
    %v1038 = vadd.f32 0.0, %v1037
    %v1039 = vpop.f32.mrb[0].mxu0
    %v1040 = vpop.f32.mrb[0].mxu0
    %v1041 = vadd.f32 0.0, %v1040
    %v1042 = vpop.f32.mrb[0].mxu0
    %1043 = vmatprep.mubr.bf16.mxu0 0
    %1044 = vmatmul.mubr.bf16.gmra.mrb[0].mxu0 %v1001
    %v1045 = vpop.f32.mrb[0].mxu0
    %v1046 = vadd.f32 0.0, %v1045
    %v1047 = vpop.f32.mrb[0].mxu0
    %v1048 = vpop.f32.mrb[0].mxu0
    %v1049 = vadd.f32 0.0, %v1048
    %v1050 = vpop.f32.mrb[0].mxu0
    %1051 = vdwg.mxu0
    %v1052 = vld [vmem:[%s367] sm:$0xff]
    %v1053 = vld [vmem:[%s367 + $0x8] sm:$0xff]
    %v1054 = vld [vmem:[%s367 + $0x10] sm:$0xff]
    %v1055 = vld [vmem:[%s367 + $0x18] sm:$0xff]
    %1057 = vset.pattern.permute.xlu0 0
    %1058 = vperm.xlu0 %1057, %v1052
    %v1059 = vpop.permute.xlu0 %1058
    %1062 = vset.pattern.permute.xlu0 0
    %1063 = vperm.xlu0 %1062, %v1053
    %v1064 = vpop.permute.xlu0 %1063
    %1067 = vset.pattern.permute.xlu0 0
    %1068 = vperm.xlu0 %1067, %v1054
    %v1069 = vpop.permute.xlu0 %1068
    %1072 = vset.pattern.permute.xlu0 0
    %1073 = vperm.xlu0 %1072, %v1055
    %v1074 = vpop.permute.xlu0 %1073
    %v1076 = vmul.f32 %v1038, %v1059
    %v1077 = vmul.f32 %v1041, %v1064
    %v1078 = vmul.f32 %v1046, %v1069
    %v1079 = vmul.f32 %v1049, %v1074
    %v1080 = vpack.c.bf16 %v1077, %v1076
    %v1081 = vpack.c.bf16 %v1079, %v1078
    %1082 = vst [vmem:[#allocation3 + $0x10] sm:$0xff] %v1080
    %1083 = vst [vmem:[#allocation3 + $0x30] sm:$0xff] %v1081
    %1084 = vst [vmem:[#allocation3 + $0x18] sm:$0xff] %v779
    %1085 = vst [vmem:[#allocation3 + $0x38] sm:$0xff] %v780
    %v1086 = vld [vmem:[#allocation3] sm:$0xff]
    %v1087 = vld [vmem:[#allocation3 + $0x8] sm:$0xff]
    %v1088 = vld [vmem:[#allocation3 + $0x10] sm:$0xff]
    %v1089 = vld [vmem:[#allocation3 + $0x18] sm:$0xff]
    %v1090 = vld [vmem:[#allocation3 + $0x20] sm:$0xff]
    %v1091 = vld [vmem:[#allocation3 + $0x28] sm:$0xff]
    %v1092 = vld [vmem:[#allocation3 + $0x30] sm:$0xff]
    %v1093 = vld [vmem:[#allocation3 + $0x38] sm:$0xff]
    %s1094 = scalar_lea.vmem [#allocation7], 256
    %v1095 = vld [vmem:[%s1094] sm:$0xf]
    %v1096 = vld [vmem:[%s1094 + $0x4] sm:$0xf]
    %v1097 = vld [vmem:[%s1094 + $0x8] sm:$0xf]
    %v1098 = vld [vmem:[%s1094 + $0xc] sm:$0xf]
    %v1099 = vld [vmem:[%s1094 + $0x10] sm:$0xf]
    %v1100 = vld [vmem:[%s1094 + $0x14] sm:$0xf]
    %v1101 = vld [vmem:[%s1094 + $0x18] sm:$0xf]
    %v1102 = vld [vmem:[%s1094 + $0x1c] sm:$0xf]
    %v1103 = vld [vmem:[%s1094 + $0x20] sm:$0xf]
    %v1104 = vld [vmem:[%s1094 + $0x24] sm:$0xf]
    %v1105 = vld [vmem:[%s1094 + $0x28] sm:$0xf]
    %v1106 = vld [vmem:[%s1094 + $0x2c] sm:$0xf]
    %v1107 = vld [vmem:[%s1094 + $0x30] sm:$0xf]
    %v1108 = vld [vmem:[%s1094 + $0x34] sm:$0xf]
    %v1109 = vld [vmem:[%s1094 + $0x38] sm:$0xf]
    %v1110 = vld [vmem:[%s1094 + $0x3c] sm:$0xf]
    %v1111 = vld [vmem:[%s1094 + $0x40] sm:$0xf]
    %v1112 = vld [vmem:[%s1094 + $0x44] sm:$0xf]
    %v1113 = vld [vmem:[%s1094 + $0x48] sm:$0xf]
    %v1114 = vld [vmem:[%s1094 + $0x4c] sm:$0xf]
    %v1115 = vld [vmem:[%s1094 + $0x50] sm:$0xf]
    %v1116 = vld [vmem:[%s1094 + $0x54] sm:$0xf]
    %v1117 = vld [vmem:[%s1094 + $0x58] sm:$0xf]
    %v1118 = vld [vmem:[%s1094 + $0x5c] sm:$0xf]
    %v1119 = vld [vmem:[%s1094 + $0x60] sm:$0xf]
    %v1120 = vld [vmem:[%s1094 + $0x64] sm:$0xf]
    %v1121 = vld [vmem:[%s1094 + $0x68] sm:$0xf]
    %v1122 = vld [vmem:[%s1094 + $0x6c] sm:$0xf]
    %v1123 = vld [vmem:[%s1094 + $0x70] sm:$0xf]
    %v1124 = vld [vmem:[%s1094 + $0x74] sm:$0xf]
    %v1125 = vld [vmem:[%s1094 + $0x78] sm:$0xf]
    %v1126 = vld [vmem:[%s1094 + $0x7c] sm:$0xf]
    %v1127 = vld [vmem:[%s1094 + $0x80] sm:$0xf]
    %v1128 = vld [vmem:[%s1094 + $0x84] sm:$0xf]
    %v1129 = vld [vmem:[%s1094 + $0x88] sm:$0xf]
    %v1130 = vld [vmem:[%s1094 + $0x8c] sm:$0xf]
    %v1131 = vld [vmem:[%s1094 + $0x90] sm:$0xf]
    %v1132 = vld [vmem:[%s1094 + $0x94] sm:$0xf]
    %v1133 = vld [vmem:[%s1094 + $0x98] sm:$0xf]
    %v1134 = vld [vmem:[%s1094 + $0x9c] sm:$0xf]
    %v1135 = vld [vmem:[%s1094 + $0xa0] sm:$0xf]
    %v1136 = vld [vmem:[%s1094 + $0xa4] sm:$0xf]
    %v1137 = vld [vmem:[%s1094 + $0xa8] sm:$0xf]
    %v1138 = vld [vmem:[%s1094 + $0xac] sm:$0xf]
    %v1139 = vld [vmem:[%s1094 + $0xb0] sm:$0xf]
    %v1140 = vld [vmem:[%s1094 + $0xb4] sm:$0xf]
    %v1141 = vld [vmem:[%s1094 + $0xb8] sm:$0xf]
    %v1142 = vld [vmem:[%s1094 + $0xbc] sm:$0xf]
    %v1143 = vld [vmem:[%s1094 + $0xc0] sm:$0xf]
    %v1144 = vld [vmem:[%s1094 + $0xc4] sm:$0xf]
    %v1145 = vld [vmem:[%s1094 + $0xc8] sm:$0xf]
    %v1146 = vld [vmem:[%s1094 + $0xcc] sm:$0xf]
    %v1147 = vld [vmem:[%s1094 + $0xd0] sm:$0xf]
    %v1148 = vld [vmem:[%s1094 + $0xd4] sm:$0xf]
    %v1149 = vld [vmem:[%s1094 + $0xd8] sm:$0xf]
    %v1150 = vld [vmem:[%s1094 + $0xdc] sm:$0xf]
    %v1151 = vld [vmem:[%s1094 + $0xe0] sm:$0xf]
    %v1152 = vld [vmem:[%s1094 + $0xe4] sm:$0xf]
    %v1153 = vld [vmem:[%s1094 + $0xe8] sm:$0xf]
    %v1154 = vld [vmem:[%s1094 + $0xec] sm:$0xf]
    %v1155 = vld [vmem:[%s1094 + $0xf0] sm:$0xf]
    %v1156 = vld [vmem:[%s1094 + $0xf4] sm:$0xf]
    %v1157 = vld [vmem:[%s1094 + $0xf8] sm:$0xf]
    %v1158 = vld [vmem:[%s1094 + $0xfc] sm:$0xf]
    %s1159 = scalar_lea.vmem %s4, 1
    %v1160 = vld [vmem:[%s1159] sm:$0x1]
    %v1162 = vlaneseq
    %v1163 = vshrl.u32 %v1162, 7
    %v1164 = vsub.s32 0, %v1163
    %v1165 = vrot.slane %v1160, %v1164
    %v1231 = vunpack.c.l.b16 %v1095
    %v1232 = vunpack.c.l.b16 %v1096
    %v1233 = vunpack.c.l.b16 %v1097
    %v1234 = vunpack.c.l.b16 %v1098
    %v1235 = vunpack.c.l.b16 %v1099
    %v1236 = vunpack.c.l.b16 %v1100
    %v1237 = vunpack.c.l.b16 %v1101
    %v1238 = vunpack.c.l.b16 %v1102
    %v1239 = vunpack.c.l.b16 %v1103
    %v1240 = vunpack.c.l.b16 %v1104
    %v1241 = vunpack.c.l.b16 %v1105
    %v1242 = vunpack.c.l.b16 %v1106
    %v1243 = vunpack.c.l.b16 %v1107
    %v1244 = vunpack.c.l.b16 %v1108
    %v1245 = vunpack.c.l.b16 %v1109
    %v1246 = vunpack.c.l.b16 %v1110
    %v1247 = vunpack.c.l.b16 %v1111
    %v1248 = vunpack.c.l.b16 %v1112
    %v1249 = vunpack.c.l.b16 %v1113
    %v1250 = vunpack.c.l.b16 %v1114
    %v1251 = vunpack.c.l.b16 %v1115
    %v1252 = vunpack.c.l.b16 %v1116
    %v1253 = vunpack.c.l.b16 %v1117
    %v1254 = vunpack.c.l.b16 %v1118
    %v1255 = vunpack.c.l.b16 %v1119
    %v1256 = vunpack.c.l.b16 %v1120
    %v1257 = vunpack.c.l.b16 %v1121
    %v1258 = vunpack.c.l.b16 %v1122
    %v1259 = vunpack.c.l.b16 %v1123
    %v1260 = vunpack.c.l.b16 %v1124
    %v1261 = vunpack.c.l.b16 %v1125
    %v1262 = vunpack.c.l.b16 %v1126
    %v1263 = vunpack.c.l.b16 %v1127
    %v1264 = vunpack.c.l.b16 %v1128
    %v1265 = vunpack.c.l.b16 %v1129
    %v1266 = vunpack.c.l.b16 %v1130
    %v1267 = vunpack.c.l.b16 %v1131
    %v1268 = vunpack.c.l.b16 %v1132
    %v1269 = vunpack.c.l.b16 %v1133
    %v1270 = vunpack.c.l.b16 %v1134
    %v1271 = vunpack.c.l.b16 %v1135
    %v1272 = vunpack.c.l.b16 %v1136
    %v1273 = vunpack.c.l.b16 %v1137
    %v1274 = vunpack.c.l.b16 %v1138
    %v1275 = vunpack.c.l.b16 %v1139
    %v1276 = vunpack.c.l.b16 %v1140
    %v1277 = vunpack.c.l.b16 %v1141
    %v1278 = vunpack.c.l.b16 %v1142
    %v1279 = vunpack.c.l.b16 %v1143
    %v1280 = vunpack.c.l.b16 %v1144
    %v1281 = vunpack.c.l.b16 %v1145
    %v1282 = vunpack.c.l.b16 %v1146
    %v1283 = vunpack.c.l.b16 %v1147
    %v1284 = vunpack.c.l.b16 %v1148
    %v1285 = vunpack.c.l.b16 %v1149
    %v1286 = vunpack.c.l.b16 %v1150
    %v1287 = vunpack.c.l.b16 %v1151
    %v1288 = vunpack.c.l.b16 %v1152
    %v1289 = vunpack.c.l.b16 %v1153
    %v1290 = vunpack.c.l.b16 %v1154
    %v1291 = vunpack.c.l.b16 %v1155
    %v1292 = vunpack.c.l.b16 %v1156
    %v1293 = vunpack.c.l.b16 %v1157
    %v1294 = vunpack.c.l.b16 %v1158
    %v1295 = vpack.c.b16 %v1232, %v1231
    %v1296 = vpack.c.b16 %v1234, %v1233
    %v1297 = vpack.c.b16 %v1236, %v1235
    %v1298 = vpack.c.b16 %v1238, %v1237
    %v1299 = vpack.c.b16 %v1240, %v1239
    %v1300 = vpack.c.b16 %v1242, %v1241
    %v1301 = vpack.c.b16 %v1244, %v1243
    %v1302 = vpack.c.b16 %v1246, %v1245
    %v1303 = vpack.c.b16 %v1248, %v1247
    %v1304 = vpack.c.b16 %v1250, %v1249
    %v1305 = vpack.c.b16 %v1252, %v1251
    %v1306 = vpack.c.b16 %v1254, %v1253
    %v1307 = vpack.c.b16 %v1256, %v1255
    %v1308 = vpack.c.b16 %v1258, %v1257
    %v1309 = vpack.c.b16 %v1260, %v1259
    %v1310 = vpack.c.b16 %v1262, %v1261
    %v1311 = vpack.c.b16 %v1264, %v1263
    %v1312 = vpack.c.b16 %v1266, %v1265
    %v1313 = vpack.c.b16 %v1268, %v1267
    %v1314 = vpack.c.b16 %v1270, %v1269
    %v1315 = vpack.c.b16 %v1272, %v1271
    %v1316 = vpack.c.b16 %v1274, %v1273
    %v1317 = vpack.c.b16 %v1276, %v1275
    %v1318 = vpack.c.b16 %v1278, %v1277
    %v1319 = vpack.c.b16 %v1280, %v1279
    %v1320 = vpack.c.b16 %v1282, %v1281
    %v1321 = vpack.c.b16 %v1284, %v1283
    %v1322 = vpack.c.b16 %v1286, %v1285
    %v1323 = vpack.c.b16 %v1288, %v1287
    %v1324 = vpack.c.b16 %v1290, %v1289
    %v1325 = vpack.c.b16 %v1292, %v1291
    %v1326 = vpack.c.b16 %v1294, %v1293
    %1359 = vmatprep.subr.bf16.mxu0 0
    %1360 = vmatpush1.bf16.msra.mxu0 %v1295
    %1361 = vmatprep.subr.bf16.mxu0 0
    %1362 = vmatpush1.bf16.msra.mxu0 %v1296
    %1363 = vmatprep.subr.bf16.mxu0 0
    %1364 = vmatpush1.bf16.msra.mxu0 %v1297
    %1365 = vmatprep.subr.bf16.mxu0 0
    %1366 = vmatpush1.bf16.msra.mxu0 %v1298
    %1367 = vmatprep.subr.bf16.mxu0 0
    %1368 = vmatpush1.bf16.msra.mxu0 %v1299
    %1369 = vmatprep.subr.bf16.mxu0 0
    %1370 = vmatpush1.bf16.msra.mxu0 %v1300
    %1371 = vmatprep.subr.bf16.mxu0 0
    %1372 = vmatpush1.bf16.msra.mxu0 %v1301
    %1373 = vmatprep.subr.bf16.mxu0 0
    %1374 = vmatpush1.bf16.msra.mxu0 %v1302
    %1375 = vmatprep.subr.bf16.mxu0 0
    %1376 = vmatpush1.bf16.msra.mxu0 %v1303
    %1377 = vmatprep.subr.bf16.mxu0 0
    %1378 = vmatpush1.bf16.msra.mxu0 %v1304
    %1379 = vmatprep.subr.bf16.mxu0 0
    %1380 = vmatpush1.bf16.msra.mxu0 %v1305
    %1381 = vmatprep.subr.bf16.mxu0 0
    %1382 = vmatpush1.bf16.msra.mxu0 %v1306
    %1383 = vmatprep.subr.bf16.mxu0 0
    %1384 = vmatpush1.bf16.msra.mxu0 %v1307
    %1385 = vmatprep.subr.bf16.mxu0 0
    %1386 = vmatpush1.bf16.msra.mxu0 %v1308
    %1387 = vmatprep.subr.bf16.mxu0 0
    %1388 = vmatpush1.bf16.msra.mxu0 %v1309
    %1389 = vmatprep.subr.bf16.mxu0 0
    %1390 = vmatpush1.bf16.msra.mxu0 %v1310
    %1391 = vmatprep.mubr.bf16.mxu0 %v1087
    %1392 = vmatmul.mubr.bf16.gmra.mrb[0].mxu0 %v1086
    %v1393 = vpop.f32.mrb[0].mxu0
    %v1394 = vadd.f32 %v1165, %v1393
    %v1395 = vpop.f32.mrb[0].mxu0
    %v1396 = vpop.f32.mrb[0].mxu0
    %v1397 = vadd.f32 %v1165, %v1396
    %v1398 = vpop.f32.mrb[0].mxu0
    %1399 = vmatprep.mubr.bf16.mxu0 %v1091
    %1400 = vmatmul.mubr.bf16.gmra.mrb[0].mxu0 %v1090
    %v1401 = vpop.f32.mrb[0].mxu0
    %v1402 = vadd.f32 %v1165, %v1401
    %v1403 = vpop.f32.mrb[0].mxu0
    %v1404 = vpop.f32.mrb[0].mxu0
    %v1405 = vadd.f32 %v1165, %v1404
    %v1406 = vpop.f32.mrb[0].mxu0
    %1407 = vdwg.mxu0
    %1408 = vmatprep.subr.bf16.mxu0 0
    %1409 = vmatpush1.bf16.msra.mxu0 %v1311
    %1410 = vmatprep.subr.bf16.mxu0 0
    %1411 = vmatpush1.bf16.msra.mxu0 %v1312
    %1412 = vmatprep.subr.bf16.mxu0 0
    %1413 = vmatpush1.bf16.msra.mxu0 %v1313
    %1414 = vmatprep.subr.bf16.mxu0 0
    %1415 = vmatpush1.bf16.msra.mxu0 %v1314
    %1416 = vmatprep.subr.bf16.mxu0 0
    %1417 = vmatpush1.bf16.msra.mxu0 %v1315
    %1418 = vmatprep.subr.bf16.mxu0 0
    %1419 = vmatpush1.bf16.msra.mxu0 %v1316
    %1420 = vmatprep.subr.bf16.mxu0 0
    %1421 = vmatpush1.bf16.msra.mxu0 %v1317
    %1422 = vmatprep.subr.bf16.mxu0 0
    %1423 = vmatpush1.bf16.msra.mxu0 %v1318
    %1424 = vmatprep.subr.bf16.mxu0 0
    %1425 = vmatpush1.bf16.msra.mxu0 %v1319
    %1426 = vmatprep.subr.bf16.mxu0 0
    %1427 = vmatpush1.bf16.msra.mxu0 %v1320
    %1428 = vmatprep.subr.bf16.mxu0 0
    %1429 = vmatpush1.bf16.msra.mxu0 %v1321
    %1430 = vmatprep.subr.bf16.mxu0 0
    %1431 = vmatpush1.bf16.msra.mxu0 %v1322
    %1432 = vmatprep.subr.bf16.mxu0 0
    %1433 = vmatpush1.bf16.msra.mxu0 %v1323
    %1434 = vmatprep.subr.bf16.mxu0 0
    %1435 = vmatpush1.bf16.msra.mxu0 %v1324
    %1436 = vmatprep.subr.bf16.mxu0 0
    %1437 = vmatpush1.bf16.msra.mxu0 %v1325
    %1438 = vmatprep.subr.bf16.mxu0 0
    %1439 = vmatpush1.bf16.msra.mxu0 %v1326
    %1440 = vmatprep.mubr.bf16.mxu0 %v1089
    %1441 = vmatmul.mubr.bf16.gmra.mrb[0].mxu0 %v1088
    %v1442 = vpop.f32.mrb[0].mxu0
    %v1443 = vadd.f32 %v1394, %v1442
    %v1444 = vpop.f32.mrb[0].mxu0
    %v1445 = vpop.f32.mrb[0].mxu0
    %v1446 = vadd.f32 %v1397, %v1445
    %v1447 = vpop.f32.mrb[0].mxu0
    %1448 = vmatprep.mubr.bf16.mxu0 %v1093
    %1449 = vmatmul.mubr.bf16.gmra.mrb[0].mxu0 %v1092
    %v1450 = vpop.f32.mrb[0].mxu0
    %v1451 = vadd.f32 %v1402, %v1450
    %v1452 = vpop.f32.mrb[0].mxu0
    %v1453 = vpop.f32.mrb[0].mxu0
    %v1454 = vadd.f32 %v1405, %v1453
    %v1455 = vpop.f32.mrb[0].mxu0
    %1456 = vdwg.mxu0
    %v1457 = vmax.f32 %v1443, 0.0
    %v1458 = vmax.f32 %v1446, 0.0
    %v1459 = vmax.f32 %v1451, 0.0
    %v1460 = vmax.f32 %v1454, 0.0
    %v1461 = vpack.c.bf16 %v1458, %v1457
    %v1462 = vpack.c.bf16 %v1460, %v1459
    %1463 = vst [vmem:[#allocation2] sm:$0xff] %v1461
    %1464 = vst [vmem:[#allocation2 + $0x8] sm:$0xff] %v1462
    %v1465 = vld [vmem:[#allocation2] sm:$0xff]
    %v1466 = vld [vmem:[#allocation2 + $0x8] sm:$0xff]
    %v1467 = vld [vmem:[%s5] sm:$0xf]
    %v1468 = vld [vmem:[%s5 + $0x4] sm:$0xf]
    %v1469 = vld [vmem:[%s5 + $0x8] sm:$0xf]
    %v1470 = vld [vmem:[%s5 + $0xc] sm:$0xf]
    %v1471 = vld [vmem:[%s5 + $0x10] sm:$0xf]
    %v1472 = vld [vmem:[%s5 + $0x14] sm:$0xf]
    %v1473 = vld [vmem:[%s5 + $0x18] sm:$0xf]
    %v1474 = vld [vmem:[%s5 + $0x1c] sm:$0xf]
    %v1475 = vld [vmem:[%s5 + $0x20] sm:$0xf]
    %v1476 = vld [vmem:[%s5 + $0x24] sm:$0xf]
    %v1477 = vld [vmem:[%s5 + $0x28] sm:$0xf]
    %v1478 = vld [vmem:[%s5 + $0x2c] sm:$0xf]
    %v1479 = vld [vmem:[%s5 + $0x30] sm:$0xf]
    %v1480 = vld [vmem:[%s5 + $0x34] sm:$0xf]
    %v1481 = vld [vmem:[%s5 + $0x38] sm:$0xf]
    %v1482 = vld [vmem:[%s5 + $0x3c] sm:$0xf]
    %v1483 = vld [vmem:[#allocation4] sm:$0xf]
    %v1484 = vld [vmem:[#allocation4 + $0x4] sm:$0xf]
    %v1485 = vld [vmem:[#allocation4 + $0x8] sm:$0xf]
    %v1486 = vld [vmem:[#allocation4 + $0xc] sm:$0xf]
    %v1487 = vld [vmem:[#allocation9] sm:$0xf]
    %v1488 = vld [vmem:[#allocation9 + $0x4] sm:$0xf]
    %v1489 = vld [vmem:[#allocation9 + $0x8] sm:$0xf]
    %v1490 = vld [vmem:[#allocation9 + $0xc] sm:$0xf]
    %v1491 = vld [vmem:[#allocation9 + $0x10] sm:$0xf]
    %v1492 = vld [vmem:[#allocation9 + $0x14] sm:$0xf]
    %v1493 = vld [vmem:[#allocation9 + $0x18] sm:$0xf]
    %v1494 = vld [vmem:[#allocation9 + $0x1c] sm:$0xf]
    %v1495 = vld [vmem:[#allocation9 + $0x20] sm:$0xf]
    %v1496 = vld [vmem:[#allocation9 + $0x24] sm:$0xf]
    %v1497 = vld [vmem:[#allocation9 + $0x28] sm:$0xf]
    %v1498 = vld [vmem:[#allocation9 + $0x2c] sm:$0xf]
    %v1499 = vld [vmem:[#allocation9 + $0x30] sm:$0xf]
    %v1500 = vld [vmem:[#allocation9 + $0x34] sm:$0xf]
    %v1501 = vld [vmem:[#allocation9 + $0x38] sm:$0xf]
    %v1502 = vld [vmem:[#allocation9 + $0x3c] sm:$0xf]
    %v1507 = vunpack.c.l.b16 %v1483
    %v1508 = vunpack.c.l.b16 %v1484
    %v1509 = vunpack.c.l.b16 %v1485
    %v1510 = vunpack.c.l.b16 %v1486
    %v1511 = vpack.c.b16 %v1508, %v1507
    %v1512 = vpack.c.b16 %v1510, %v1509
    %v1531 = vunpack.c.l.b16 %v1487
    %v1532 = vunpack.c.l.b16 %v1488
    %v1533 = vunpack.c.l.b16 %v1489
    %v1534 = vunpack.c.l.b16 %v1490
    %v1535 = vunpack.c.l.b16 %v1491
    %v1536 = vunpack.c.l.b16 %v1492
    %v1537 = vunpack.c.l.b16 %v1493
    %v1538 = vunpack.c.l.b16 %v1494
    %v1539 = vunpack.c.l.b16 %v1495
    %v1540 = vunpack.c.l.b16 %v1496
    %v1541 = vunpack.c.l.b16 %v1497
    %v1542 = vunpack.c.l.b16 %v1498
    %v1543 = vunpack.c.l.b16 %v1499
    %v1544 = vunpack.c.l.b16 %v1500
    %v1545 = vunpack.c.l.b16 %v1501
    %v1546 = vunpack.c.l.b16 %v1502
    %v1547 = vpack.c.b16 %v1532, %v1531
    %v1548 = vpack.c.b16 %v1534, %v1533
    %v1549 = vpack.c.b16 %v1536, %v1535
    %v1550 = vpack.c.b16 %v1538, %v1537
    %v1551 = vpack.c.b16 %v1540, %v1539
    %v1552 = vpack.c.b16 %v1542, %v1541
    %v1553 = vpack.c.b16 %v1544, %v1543
    %v1554 = vpack.c.b16 %v1546, %v1545
    %1563 = vmatprep.subr.bf16.mxu0 0
    %1564 = vmatpush1.bf16.msra.mxu0 %v1547
    %1565 = vmatprep.subr.bf16.mxu0 0
    %1566 = vmatpush1.bf16.msra.mxu0 %v1548
    %1567 = vmatprep.subr.bf16.mxu0 0
    %1568 = vmatpush1.bf16.msra.mxu0 %v1549
    %1569 = vmatprep.subr.bf16.mxu0 0
    %1570 = vmatpush1.bf16.msra.mxu0 %v1550
    %1571 = vmatprep.subr.bf16.mxu0 0
    %1572 = vmatpush1.bf16.msra.mxu0 %v1551
    %1573 = vmatprep.subr.bf16.mxu0 0
    %1574 = vmatpush1.bf16.msra.mxu0 %v1552
    %1575 = vmatprep.subr.bf16.mxu0 0
    %1576 = vmatpush1.bf16.msra.mxu0 %v1553
    %1577 = vmatprep.subr.bf16.mxu0 0
    %1578 = vmatpush1.bf16.msra.mxu0 %v1554
    %1579 = vmatprep.subr.bf16.mxu0 0
    %1580 = vmatpush1.bf16.msra.mxu0 0
    %1581 = vmatprep.subr.bf16.mxu0 0
    %1582 = vmatpush1.bf16.msra.mxu0 0
    %1583 = vmatprep.subr.bf16.mxu0 0
    %1584 = vmatpush1.bf16.msra.mxu0 0
    %1585 = vmatprep.subr.bf16.mxu0 0
    %1586 = vmatpush1.bf16.msra.mxu0 0
    %1587 = vmatprep.subr.bf16.mxu0 0
    %1588 = vmatpush1.bf16.msra.mxu0 0
    %1589 = vmatprep.subr.bf16.mxu0 0
    %1590 = vmatpush1.bf16.msra.mxu0 0
    %1591 = vmatprep.subr.bf16.mxu0 0
    %1592 = vmatpush1.bf16.msra.mxu0 0
    %1593 = vmatprep.subr.bf16.mxu0 0
    %1594 = vmatpush1.bf16.msra.mxu0 0
    %1595 = vmatprep.mubr.bf16.mxu0 0
    %1596 = vmatmul.mubr.bf16.gmra.mrb[0].mxu0 %v1511
    %v1597 = vpop.f32.mrb[0].mxu0
    %v1598 = vadd.f32 0.0, %v1597
    %v1599 = vpop.f32.mrb[0].mxu0
    %v1600 = vpop.f32.mrb[0].mxu0
    %v1601 = vadd.f32 0.0, %v1600
    %v1602 = vpop.f32.mrb[0].mxu0
    %1603 = vmatprep.mubr.bf16.mxu0 0
    %1604 = vmatmul.mubr.bf16.gmra.mrb[0].mxu0 %v1512
    %v1605 = vpop.f32.mrb[0].mxu0
    %v1606 = vadd.f32 0.0, %v1605
    %v1607 = vpop.f32.mrb[0].mxu0
    %v1608 = vpop.f32.mrb[0].mxu0
    %v1609 = vadd.f32 0.0, %v1608
    %v1610 = vpop.f32.mrb[0].mxu0
    %1611 = vdwg.mxu0
    %v1628 = vunpack.c.l.b16 %v1467
    %v1629 = vunpack.c.l.b16 %v1468
    %v1630 = vunpack.c.l.b16 %v1469
    %v1631 = vunpack.c.l.b16 %v1470
    %v1632 = vunpack.c.l.b16 %v1471
    %v1633 = vunpack.c.l.b16 %v1472
    %v1634 = vunpack.c.l.b16 %v1473
    %v1635 = vunpack.c.l.b16 %v1474
    %v1636 = vunpack.c.l.b16 %v1475
    %v1637 = vunpack.c.l.b16 %v1476
    %v1638 = vunpack.c.l.b16 %v1477
    %v1639 = vunpack.c.l.b16 %v1478
    %v1640 = vunpack.c.l.b16 %v1479
    %v1641 = vunpack.c.l.b16 %v1480
    %v1642 = vunpack.c.l.b16 %v1481
    %v1643 = vunpack.c.l.b16 %v1482
    %v1644 = vpack.c.b16 %v1629, %v1628
    %v1645 = vpack.c.b16 %v1631, %v1630
    %v1646 = vpack.c.b16 %v1633, %v1632
    %v1647 = vpack.c.b16 %v1635, %v1634
    %v1648 = vpack.c.b16 %v1637, %v1636
    %v1649 = vpack.c.b16 %v1639, %v1638
    %v1650 = vpack.c.b16 %v1641, %v1640
    %v1651 = vpack.c.b16 %v1643, %v1642
    %1660 = vmatprep.subr.bf16.mxu0 0
    %1661 = vmatpush1.bf16.msra.mxu0 %v1644
    %1662 = vmatprep.subr.bf16.mxu0 0
    %1663 = vmatpush1.bf16.msra.mxu0 %v1645
    %1664 = vmatprep.subr.bf16.mxu0 0
    %1665 = vmatpush1.bf16.msra.mxu0 %v1646
    %1666 = vmatprep.subr.bf16.mxu0 0
    %1667 = vmatpush1.bf16.msra.mxu0 %v1647
    %1668 = vmatprep.subr.bf16.mxu0 0
    %1669 = vmatpush1.bf16.msra.mxu0 %v1648
    %1670 = vmatprep.subr.bf16.mxu0 0
    %1671 = vmatpush1.bf16.msra.mxu0 %v1649
    %1672 = vmatprep.subr.bf16.mxu0 0
    %1673 = vmatpush1.bf16.msra.mxu0 %v1650
    %1674 = vmatprep.subr.bf16.mxu0 0
    %1675 = vmatpush1.bf16.msra.mxu0 %v1651
    %1676 = vmatprep.subr.bf16.mxu0 0
    %1677 = vmatpush1.bf16.msra.mxu0 0
    %1678 = vmatprep.subr.bf16.mxu0 0
    %1679 = vmatpush1.bf16.msra.mxu0 0
    %1680 = vmatprep.subr.bf16.mxu0 0
    %1681 = vmatpush1.bf16.msra.mxu0 0
    %1682 = vmatprep.subr.bf16.mxu0 0
    %1683 = vmatpush1.bf16.msra.mxu0 0
    %1684 = vmatprep.subr.bf16.mxu0 0
    %1685 = vmatpush1.bf16.msra.mxu0 0
    %1686 = vmatprep.subr.bf16.mxu0 0
    %1687 = vmatpush1.bf16.msra.mxu0 0
    %1688 = vmatprep.subr.bf16.mxu0 0
    %1689 = vmatpush1.bf16.msra.mxu0 0
    %1690 = vmatprep.subr.bf16.mxu0 0
    %1691 = vmatpush1.bf16.msra.mxu0 0
    %1692 = vmatprep.mubr.bf16.mxu0 0
    %1693 = vmatmul.mubr.bf16.gmra.mrb[0].mxu0 %v1465
    %v1694 = vpop.f32.mrb[0].mxu0
    %v1695 = vadd.f32 %v1598, %v1694
    %v1696 = vpop.f32.mrb[0].mxu0
    %v1697 = vpop.f32.mrb[0].mxu0
    %v1698 = vadd.f32 %v1601, %v1697
    %v1699 = vpop.f32.mrb[0].mxu0
    %1700 = vmatprep.mubr.bf16.mxu0 0
    %1701 = vmatmul.mubr.bf16.gmra.mrb[0].mxu0 %v1466
    %v1702 = vpop.f32.mrb[0].mxu0
    %v1703 = vadd.f32 %v1606, %v1702
    %v1704 = vpop.f32.mrb[0].mxu0
    %v1705 = vpop.f32.mrb[0].mxu0
    %v1706 = vadd.f32 %v1609, %v1705
    %v1707 = vpop.f32.mrb[0].mxu0
    %1708 = vdwg.mxu0
    %v1709 = vld [vmem:[%s7] sm:$0x1]
    %v1711 = vlaneseq
    %v1712 = vshrl.u32 %v1711, 7
    %v1713 = vsub.s32 0, %v1712
    %v1714 = vrot.slane %v1709, %v1713
    %v1716 = vadd.f32 %v1695, %v1714
    %v1717 = vadd.f32 %v1698, %v1714
    %v1718 = vadd.f32 %v1703, %v1714
    %v1719 = vadd.f32 %v1706, %v1714
    %v1720 = vpack.c.bf16 %v1717, %v1716
    %v1721 = vpack.c.bf16 %v1719, %v1718
    %v1724 = vunpack.c.l.b16 %v1720
    %v1725 = vunpack.c.h.b16 %v1720
    %v1726 = vunpack.c.l.b16 %v1721
    %v1727 = vunpack.c.h.b16 %v1721
    %v1728 = vpack.c.b16 %v1724, %v1724
    %v1729 = vpack.c.b16 %v1725, %v1725
    %v1730 = vpack.c.b16 %v1726, %v1726
    %v1731 = vpack.c.b16 %v1727, %v1727
    %1736 = vst [vmem:[#allocation10] sm:$0xf] %v1728
    %1737 = vst [vmem:[#allocation10 + $0x4] sm:$0xf] %v1729
    %1738 = vst [vmem:[#allocation10 + $0x8] sm:$0xf] %v1730
    %1739 = vst [vmem:[#allocation10 + $0xc] sm:$0xf] %v1731
    // Predicated region
    $region46: #{tpu_custom_call.1} parent=1 // pred_check
      _
    $region47: #{tpu_custom_call.1} parent=1 // pred_check_branch
      %1741 = sbr.rel (0) target = $region49
    $region48: #{tpu_custom_call.1} parent=1 // pred_region
      %s1743 = ssub.s32 256, 256
      %1744 = vsyncadd [#allocation6], %s1743
      %s1745 = sshll.u32 [#allocation10], 4
      %s1746 = int_to_ptr.vmem [resolvable:$true] %s1745
      %1751 = dma.vmem_to_hbm [thread:$0]  %s1746, 256, %s8, [#allocation6], 64, 64, 4
    $region49: #{tpu_custom_call.1} parent=1 // pred_fallthru
      _
    // Predicated region
    $region50: #{tpu_custom_call.1} parent=1 // pred_check
      _
    $region51: #{tpu_custom_call.1} parent=1 // pred_check_branch
      %1753 = sbr.rel (0) target = $region53
    $region52: #{tpu_custom_call.1} parent=1 // pred_region
      %1754 = dma.done [#allocation6], 256
    $region53: #{tpu_custom_call.1} parent=1 // pred_fallthru
      _
    %1755 = vsyncpa [#allocation5], 1
    %1756 = vsyncpa [#allocation8], 1
    %1757 = vsyncpa [#allocation6], 1

</llo_original>
